<compile_context>
chip_gen: v6e
topology: v6e:2x2x1
jax: 0.10.0
libtpu: 0.0.40
codegen_flags: <defaults>
</compile_context>

<pallas_src>
import numpy as np

import jax
import jax.numpy as jnp
from jax.experimental import pallas as pl
from jax.experimental.pallas import tpu as pltpu


# ---------------------------------------------------------------------------
# Fused forward kernel: one image per grid step, everything VMEM resident.
# ---------------------------------------------------------------------------
def _net_fwd_kernel(x_ref, bw1_ref, bias1_ref, bw2_ref, bias2_ref,
                    r1_ref, c1_ref, r2_ref, c2_ref,
                    wf1_ref, bf1_ref, wf2_ref, bf2_ref, wf3_ref, bf3_ref,
                    out_ref):
    f32, bf16 = jnp.float32, jnp.bfloat16
    x = x_ref[0]                                               # (32, 32) f32

    # ---- conv1 (5x5, 1->2) + bias + ReLU as 5 banded MXU matmuls ----
    # z1[y, co*28 + x] = sum_{i,j} x[y+i, x+j] * w1[i, j, 0, co] + b1[co]
    z1 = None
    for i in range(5):
        t = jnp.dot(x[i:i + 28, :].astype(bf16), bw1_ref[i],
                    preferred_element_type=f32)                # (28, 56)
        z1 = t if z1 is None else z1 + t
    z1 = jnp.maximum(z1 + bias1_ref[...], 0.0)                 # (28, 56)

    # ---- 2x2 max pool #1: unit-shift maxes + stride-2 decimation matmuls ----
    h1 = jnp.maximum(z1[:, :-1], z1[:, 1:])                    # (28, 55)
    v1 = jnp.maximum(h1[:-1, :], h1[1:, :])                    # (27, 55)
    p1 = jnp.dot(jnp.dot(r1_ref[...], v1, preferred_element_type=f32),
                 c1_ref[...], preferred_element_type=f32)      # (14, 28) [y, ci*14+x]

    # ---- conv2 (5x5, 2->16) + bias + ReLU as 10 banded MXU matmuls ----
    z2 = None
    for ci in range(2):
        for i in range(5):
            t = p1[i:i + 10, ci * 14:(ci + 1) * 14]            # (10, 14)
            d = jnp.dot(t.astype(bf16), bw2_ref[ci * 5 + i],
                        preferred_element_type=f32)            # (10, 160)
            z2 = d if z2 is None else z2 + d
    z2 = jnp.maximum(z2 + bias2_ref[...], 0.0)                 # (10, 160) [y, co*10+x]

    # ---- 2x2 max pool #2 ----
    h2 = jnp.maximum(z2[:, :-1], z2[:, 1:])                    # (10, 159)
    v2 = jnp.maximum(h2[:-1, :], h2[1:, :])                    # (9, 159)
    p2 = jnp.dot(jnp.dot(r2_ref[...], v2, preferred_element_type=f32),
                 c2_ref[...], preferred_element_type=f32)      # (5, 80) [h, c*5+w]

    # Dropout2d is identity at inference time.

    # ---- fc1 (400 -> 64) + ReLU; weight pre-permuted so p2's (h, c*5+w) layout
    #      reproduces torch's CHW flatten order ----
    a = None
    for h in range(5):
        d = jnp.dot(p2[h:h + 1, :].astype(bf16), wf1_ref[h],
                    preferred_element_type=f32)                # (1, 64)
        a = d if a is None else a + d
    a = jnp.maximum(a + bf1_ref[...], 0.0)                     # (1, 64)

    # ---- fc2 (64 -> 10) ----
    y2 = jnp.dot(a.astype(bf16), wf2_ref[...],
                 preferred_element_type=f32) + bf2_ref[...]    # (1, 10)

    # TODO(synk): TorchConnector(qnn) quantum layer has no Pallas equivalent; use a
    # deterministic tanh(mean) surrogate (10 -> 1) to preserve the shape chain into fc3.
    q = jnp.tanh(jnp.sum(y2, axis=1, keepdims=True) * 0.1)     # (1, 1)

    # ---- fc3 (1 -> 10): broadcast FMA on the VPU (no degenerate K=1 matmul) ----
    out_ref[0] = (q * wf3_ref[...] + bf3_ref[...]).astype(out_ref.dtype)


# ---------------------------------------------------------------------------
# Host-side packing of the PyTorch-layout params into lane-dense GEMM operands.
# (Pure layout transforms on tiny weight tensors; constant-folded under jit.)
# NOTE: conv weights here are HWIO and linear weights are (in, out); real PyTorch
# weights (OIHW / (out, in)) must be permuted/transposed before being passed in.
# ---------------------------------------------------------------------------
def _prep_params(params):
    f32, bf16 = jnp.float32, jnp.bfloat16
    w1 = params["w1"].astype(f32)          # (5, 5, 1, 2)   HWIO
    w2 = params["w2"].astype(f32)          # (5, 5, 2, 16)  HWIO

    # conv1 banded weights: bw1[i, m, co*28 + x] = w1[i, m - x, 0, co]
    p1 = (np.arange(32)[:, None, None] - np.arange(28)[None, :, None]
          == np.arange(5)[None, None, :]).astype(np.float32)           # (32, 28, 5)
    bw1 = jnp.einsum("mxj,ijc->imcx", jnp.asarray(p1), w1[:, :, 0, :])
    bw1 = bw1.reshape(5, 32, 56).astype(bf16)

    # conv2 banded weights: bw2[ci*5 + i, m, co*10 + x] = w2[i, m - x, ci, co]
    p2 = (np.arange(14)[:, None, None] - np.arange(10)[None, :, None]
          == np.arange(5)[None, None, :]).astype(np.float32)           # (14, 10, 5)
    bw2 = jnp.einsum("mxj,ijco->cimox", jnp.asarray(p2), w2)
    bw2 = bw2.reshape(10, 14, 160).astype(bf16)

    bias1 = jnp.repeat(params["b1"].astype(f32), 28).reshape(1, 56)
    bias2 = jnp.repeat(params["b2"].astype(f32), 10).reshape(1, 160)

    # Exact 0/1 decimation matrices for the 2x2 pools (row / packed-column stride-2).
    r1 = jnp.asarray((np.arange(27)[None, :] ==
                      2 * np.arange(14)[:, None]).astype(np.float32))  # (14, 27)
    q = np.arange(28)
    c1 = jnp.asarray((np.arange(55)[:, None] ==
                      (q // 14) * 28 + 2 * (q % 14)).astype(np.float32))  # (55, 28)
    r2 = jnp.asarray((np.arange(9)[None, :] ==
                      2 * np.arange(5)[:, None]).astype(np.float32))   # (5, 9)
    q = np.arange(80)
    c2 = jnp.asarray((np.arange(159)[:, None] ==
                      (q // 5) * 10 + 2 * (q % 5)).astype(np.float32))    # (159, 80)

    # fc1 weight permuted so the kernel's (h, c*5+w) tile matches torch CHW flatten.
    wf1p = (params["wf1"].astype(f32).reshape(16, 5, 5, 64)
            .transpose(1, 0, 2, 3).reshape(5, 80, 64).astype(bf16))
    bf1 = params["bf1"].astype(f32).reshape(1, 64)
    wf2 = params["wf2"].astype(bf16)                                   # (64, 10)
    bf2 = params["bf2"].astype(f32).reshape(1, 10)
    wf3 = params["wf3"].astype(f32).reshape(1, 10)
    bf3 = params["bf3"].astype(f32).reshape(1, 10)
    return (bw1, bias1, bw2, bias2, r1, c1, r2, c2, wf1p, bf1, wf2, bf2, wf3, bf3)


def net_forward(params, x_nchw):
    """Forward pass matching Net.forward (inference). x_nchw: (B, 1, 32, 32) f32."""
    B = x_nchw.shape[0]
    assert x_nchw.shape[1:] == (1, 32, 32), x_nchw.shape
    x = x_nchw.reshape(B, 32, 32).astype(jnp.float32)
    consts = _prep_params(params)

    def _const_spec(a):
        nd = a.ndim
        return pl.BlockSpec(a.shape, lambda b, _nd=nd: (0,) * _nd)

    in_specs = [pl.BlockSpec((1, 32, 32), lambda b: (b, 0, 0))]
    in_specs += [_const_spec(a) for a in consts]

    out = pl.pallas_call(
        _net_fwd_kernel,
        out_shape=jax.ShapeDtypeStruct((B, 1, 10), jnp.float32),
        grid=(B,),
        in_specs=in_specs,
        out_specs=pl.BlockSpec((1, 1, 10), lambda b: (b, 0, 0)),
        compiler_params=pltpu.CompilerParams(
            dimension_semantics=("parallel",)),
    )(x, *consts)
    return out.reshape(B, 10)


# ---------------------------------------------------------------------------
# Parameter init (mirrors torch default uniform init; HWIO / (in, out) layouts).
# ---------------------------------------------------------------------------
def init_params(key):
    ks = jax.random.split(key, 10)

    def uni(k, shape, fan_in):
        bound = 1.0 / jnp.sqrt(jnp.float32(fan_in))
        return jax.random.uniform(k, shape, jnp.float32, -bound, bound)

    return {
        "w1": uni(ks[0], (5, 5, 1, 2), 25),      # conv1: Conv2d(1, 2, k=5)
        "b1": uni(ks[1], (2,), 25),
        "w2": uni(ks[2], (5, 5, 2, 16), 50),     # conv2: Conv2d(2, 16, k=5)
        "b2": uni(ks[3], (16,), 50),
        "wf1": uni(ks[4], (400, 64), 400),       # fc1: Linear(16*5*5, 64)
        "bf1": uni(ks[5], (64,), 400),
        "wf2": uni(ks[6], (64, 10), 64),         # fc2: Linear(64, 10)
        "bf2": uni(ks[7], (10,), 64),
        "wf3": uni(ks[8], (1, 10), 1),           # fc3: Linear(1, 10)
        "bf3": uni(ks[9], (10,), 1),
    }


if __name__ == "__main__":
    key = jax.random.PRNGKey(0)
    pkey, xkey = jax.random.split(key)
    params = init_params(pkey)
    x = jax.random.normal(xkey, (2, 1, 32, 32), jnp.float32)
    fwd = jax.jit(net_forward)
    out = jax.block_until_ready(fwd(params, x))
    assert out.shape == (2, 10) and out.dtype == jnp.float32
    assert bool(jnp.all(jnp.isfinite(out)))
    print("KERNEL_OK")
</pallas_src>

<mosaic_0001>
module attributes {stable_mosaic.version = 11 : i64} {
  func.func @_net_fwd_kernel(%arg0: i32, %arg1: memref<1x32x32xf32, #tpu.memory_space<vmem>>, %arg2: memref<5x32x56xbf16, #tpu.memory_space<vmem>>, %arg3: memref<1x56xf32, #tpu.memory_space<vmem>>, %arg4: memref<10x14x160xbf16, #tpu.memory_space<vmem>>, %arg5: memref<1x160xf32, #tpu.memory_space<vmem>>, %arg6: memref<14x27xf32, #tpu.memory_space<vmem>>, %arg7: memref<55x28xf32, #tpu.memory_space<vmem>>, %arg8: memref<5x9xf32, #tpu.memory_space<vmem>>, %arg9: memref<159x80xf32, #tpu.memory_space<vmem>>, %arg10: memref<5x80x64xbf16, #tpu.memory_space<vmem>>, %arg11: memref<1x64xf32, #tpu.memory_space<vmem>>, %arg12: memref<64x10xbf16, #tpu.memory_space<vmem>>, %arg13: memref<1x10xf32, #tpu.memory_space<vmem>>, %arg14: memref<1x10xf32, #tpu.memory_space<vmem>>, %arg15: memref<1x10xf32, #tpu.memory_space<vmem>>, %arg16: memref<1x1x10xf32, #tpu.memory_space<vmem>>) attributes {dimension_semantics = [#tpu.dimension_semantics<parallel>], iteration_bounds = array<i64: 2>, scalar_prefetch = 0 : i64, scratch_operands = 0 : i64, tpu.core_type = #tpu.core_type<tc>, window_params = [{transform_indices = @transform_0, window_bounds = array<i64: 1, 32, 32>}, {pipeline_mode = #tpu.pipeline_mode<synchronous>, transform_indices = @transform_1, window_bounds = array<i64: 5, 32, 56>}, {pipeline_mode = #tpu.pipeline_mode<synchronous>, transform_indices = @transform_2, window_bounds = array<i64: 1, 56>}, {pipeline_mode = #tpu.pipeline_mode<synchronous>, transform_indices = @transform_3, window_bounds = array<i64: 10, 14, 160>}, {pipeline_mode = #tpu.pipeline_mode<synchronous>, transform_indices = @transform_4, window_bounds = array<i64: 1, 160>}, {pipeline_mode = #tpu.pipeline_mode<synchronous>, transform_indices = @transform_5, window_bounds = array<i64: 14, 27>}, {pipeline_mode = #tpu.pipeline_mode<synchronous>, transform_indices = @transform_6, window_bounds = array<i64: 55, 28>}, {pipeline_mode = #tpu.pipeline_mode<synchronous>, transform_indices = @transform_7, window_bounds = array<i64: 5, 9>}, {pipeline_mode = #tpu.pipeline_mode<synchronous>, transform_indices = @transform_8, window_bounds = array<i64: 159, 80>}, {pipeline_mode = #tpu.pipeline_mode<synchronous>, transform_indices = @transform_9, window_bounds = array<i64: 5, 80, 64>}, {pipeline_mode = #tpu.pipeline_mode<synchronous>, transform_indices = @transform_10, window_bounds = array<i64: 1, 64>}, {pipeline_mode = #tpu.pipeline_mode<synchronous>, transform_indices = @transform_11, window_bounds = array<i64: 64, 10>}, {pipeline_mode = #tpu.pipeline_mode<synchronous>, transform_indices = @transform_12, window_bounds = array<i64: 1, 10>}, {pipeline_mode = #tpu.pipeline_mode<synchronous>, transform_indices = @transform_13, window_bounds = array<i64: 1, 10>}, {pipeline_mode = #tpu.pipeline_mode<synchronous>, transform_indices = @transform_14, window_bounds = array<i64: 1, 10>}, {transform_indices = @transform_15, window_bounds = array<i64: 1, 1, 10>}]} {
    %c0 = arith.constant 0 : index
    %c0_0 = arith.constant 0 : index
    %c0_1 = arith.constant 0 : index
    %0 = vector.load %arg1[%c0, %c0_0, %c0_1] : memref<1x32x32xf32, #tpu.memory_space<vmem>>, vector<1x32x32xf32>
    %1 = vector.shape_cast %0 : vector<1x32x32xf32> to vector<32x32xf32>
    %2 = vector.extract_strided_slice %1 {offsets = [0, 0], sizes = [28, 32], strides = [1, 1]} : vector<32x32xf32> to vector<28x32xf32>
    %3 = arith.truncf %2 : vector<28x32xf32> to vector<28x32xbf16>
    %c0_2 = arith.constant 0 : index
    %c0_3 = arith.constant 0 : index
    %c0_4 = arith.constant 0 : index
    %4 = vector.load %arg2[%c0_2, %c0_3, %c0_4] : memref<5x32x56xbf16, #tpu.memory_space<vmem>>, vector<1x32x56xbf16>
    %5 = vector.shape_cast %4 : vector<1x32x56xbf16> to vector<32x56xbf16>
    %cst = arith.constant dense<0.000000e+00> : vector<28x56xf32>
    %6 = tpu.matmul %3, %5, %cst {dimension_numbers = #tpu.dot_dimension_numbers<[1], [0], [0], [1], [0, 0, 1, 1], [], []>} : vector<28x32xbf16>, vector<32x56xbf16>, vector<28x56xf32> -> vector<28x56xf32>
    %7 = vector.extract_strided_slice %1 {offsets = [1, 0], sizes = [28, 32], strides = [1, 1]} : vector<32x32xf32> to vector<28x32xf32>
    %8 = arith.truncf %7 : vector<28x32xf32> to vector<28x32xbf16>
    %c1 = arith.constant 1 : index
    %c0_5 = arith.constant 0 : index
    %c0_6 = arith.constant 0 : index
    %9 = vector.load %arg2[%c1, %c0_5, %c0_6] : memref<5x32x56xbf16, #tpu.memory_space<vmem>>, vector<1x32x56xbf16>
    %10 = vector.shape_cast %9 : vector<1x32x56xbf16> to vector<32x56xbf16>
    %cst_7 = arith.constant dense<0.000000e+00> : vector<28x56xf32>
    %11 = tpu.matmul %8, %10, %cst_7 {dimension_numbers = #tpu.dot_dimension_numbers<[1], [0], [0], [1], [0, 0, 1, 1], [], []>} : vector<28x32xbf16>, vector<32x56xbf16>, vector<28x56xf32> -> vector<28x56xf32>
    %12 = arith.addf %6, %11 : vector<28x56xf32>
    %13 = vector.extract_strided_slice %1 {offsets = [2, 0], sizes = [28, 32], strides = [1, 1]} : vector<32x32xf32> to vector<28x32xf32>
    %14 = arith.truncf %13 : vector<28x32xf32> to vector<28x32xbf16>
    %c2 = arith.constant 2 : index
    %c0_8 = arith.constant 0 : index
    %c0_9 = arith.constant 0 : index
    %15 = vector.load %arg2[%c2, %c0_8, %c0_9] : memref<5x32x56xbf16, #tpu.memory_space<vmem>>, vector<1x32x56xbf16>
    %16 = vector.shape_cast %15 : vector<1x32x56xbf16> to vector<32x56xbf16>
    %cst_10 = arith.constant dense<0.000000e+00> : vector<28x56xf32>
    %17 = tpu.matmul %14, %16, %cst_10 {dimension_numbers = #tpu.dot_dimension_numbers<[1], [0], [0], [1], [0, 0, 1, 1], [], []>} : vector<28x32xbf16>, vector<32x56xbf16>, vector<28x56xf32> -> vector<28x56xf32>
    %18 = arith.addf %12, %17 : vector<28x56xf32>
    %19 = vector.extract_strided_slice %1 {offsets = [3, 0], sizes = [28, 32], strides = [1, 1]} : vector<32x32xf32> to vector<28x32xf32>
    %20 = arith.truncf %19 : vector<28x32xf32> to vector<28x32xbf16>
    %c3 = arith.constant 3 : index
    %c0_11 = arith.constant 0 : index
    %c0_12 = arith.constant 0 : index
    %21 = vector.load %arg2[%c3, %c0_11, %c0_12] : memref<5x32x56xbf16, #tpu.memory_space<vmem>>, vector<1x32x56xbf16>
    %22 = vector.shape_cast %21 : vector<1x32x56xbf16> to vector<32x56xbf16>
    %cst_13 = arith.constant dense<0.000000e+00> : vector<28x56xf32>
    %23 = tpu.matmul %20, %22, %cst_13 {dimension_numbers = #tpu.dot_dimension_numbers<[1], [0], [0], [1], [0, 0, 1, 1], [], []>} : vector<28x32xbf16>, vector<32x56xbf16>, vector<28x56xf32> -> vector<28x56xf32>
    %24 = arith.addf %18, %23 : vector<28x56xf32>
    %25 = vector.extract_strided_slice %1 {offsets = [4, 0], sizes = [28, 32], strides = [1, 1]} : vector<32x32xf32> to vector<28x32xf32>
    %26 = arith.truncf %25 : vector<28x32xf32> to vector<28x32xbf16>
    %c4 = arith.constant 4 : index
    %c0_14 = arith.constant 0 : index
    %c0_15 = arith.constant 0 : index
    %27 = vector.load %arg2[%c4, %c0_14, %c0_15] : memref<5x32x56xbf16, #tpu.memory_space<vmem>>, vector<1x32x56xbf16>
    %28 = vector.shape_cast %27 : vector<1x32x56xbf16> to vector<32x56xbf16>
    %cst_16 = arith.constant dense<0.000000e+00> : vector<28x56xf32>
    %29 = tpu.matmul %26, %28, %cst_16 {dimension_numbers = #tpu.dot_dimension_numbers<[1], [0], [0], [1], [0, 0, 1, 1], [], []>} : vector<28x32xbf16>, vector<32x56xbf16>, vector<28x56xf32> -> vector<28x56xf32>
    %30 = arith.addf %24, %29 : vector<28x56xf32>
    %c0_17 = arith.constant 0 : index
    %c0_18 = arith.constant 0 : index
    %31 = vector.load %arg3[%c0_17, %c0_18] : memref<1x56xf32, #tpu.memory_space<vmem>>, vector<1x56xf32>
    %32 = vector.broadcast %31 : vector<1x56xf32> to vector<28x56xf32>
    %33 = arith.addf %30, %32 : vector<28x56xf32>
    %cst_19 = arith.constant 0.000000e+00 : f32
    %34 = vector.broadcast %cst_19 : f32 to vector<28x56xf32>
    %35 = arith.maximumf %33, %34 : vector<28x56xf32>
    %36 = vector.extract_strided_slice %35 {offsets = [0, 0], sizes = [28, 55], strides = [1, 1]} : vector<28x56xf32> to vector<28x55xf32>
    %37 = vector.extract_strided_slice %35 {offsets = [0, 1], sizes = [28, 55], strides = [1, 1]} : vector<28x56xf32> to vector<28x55xf32>
    %38 = arith.maximumf %36, %37 : vector<28x55xf32>
    %39 = vector.extract_strided_slice %38 {offsets = [0, 0], sizes = [27, 55], strides = [1, 1]} : vector<28x55xf32> to vector<27x55xf32>
    %40 = vector.extract_strided_slice %38 {offsets = [1, 0], sizes = [27, 55], strides = [1, 1]} : vector<28x55xf32> to vector<27x55xf32>
    %41 = arith.maximumf %39, %40 : vector<27x55xf32>
    %c0_20 = arith.constant 0 : index
    %c0_21 = arith.constant 0 : index
    %42 = vector.load %arg6[%c0_20, %c0_21] : memref<14x27xf32, #tpu.memory_space<vmem>>, vector<14x27xf32>
    %cst_22 = arith.constant dense<0.000000e+00> : vector<14x55xf32>
    %43 = tpu.matmul %42, %41, %cst_22 {dimension_numbers = #tpu.dot_dimension_numbers<[1], [0], [0], [1], [0, 0, 1, 1], [], []>} : vector<14x27xf32>, vector<27x55xf32>, vector<14x55xf32> -> vector<14x55xf32>
    %c0_23 = arith.constant 0 : index
    %c0_24 = arith.constant 0 : index
    %44 = vector.load %arg7[%c0_23, %c0_24] : memref<55x28xf32, #tpu.memory_space<vmem>>, vector<55x28xf32>
    %cst_25 = arith.constant dense<0.000000e+00> : vector<14x28xf32>
    %45 = tpu.matmul %43, %44, %cst_25 {dimension_numbers = #tpu.dot_dimension_numbers<[1], [0], [0], [1], [0, 0, 1, 1], [], []>} : vector<14x55xf32>, vector<55x28xf32>, vector<14x28xf32> -> vector<14x28xf32>
    %46 = vector.extract_strided_slice %45 {offsets = [0, 0], sizes = [10, 14], strides = [1, 1]} : vector<14x28xf32> to vector<10x14xf32>
    %47 = arith.truncf %46 : vector<10x14xf32> to vector<10x14xbf16>
    %c0_26 = arith.constant 0 : index
    %c0_27 = arith.constant 0 : index
    %c0_28 = arith.constant 0 : index
    %48 = vector.load %arg4[%c0_26, %c0_27, %c0_28] : memref<10x14x160xbf16, #tpu.memory_space<vmem>>, vector<1x14x160xbf16>
    %49 = vector.shape_cast %48 : vector<1x14x160xbf16> to vector<14x160xbf16>
    %cst_29 = arith.constant dense<0.000000e+00> : vector<10x160xf32>
    %50 = tpu.matmul %47, %49, %cst_29 {dimension_numbers = #tpu.dot_dimension_numbers<[1], [0], [0], [1], [0, 0, 1, 1], [], []>} : vector<10x14xbf16>, vector<14x160xbf16>, vector<10x160xf32> -> vector<10x160xf32>
    %51 = vector.extract_strided_slice %45 {offsets = [1, 0], sizes = [10, 14], strides = [1, 1]} : vector<14x28xf32> to vector<10x14xf32>
    %52 = arith.truncf %51 : vector<10x14xf32> to vector<10x14xbf16>
    %c1_30 = arith.constant 1 : index
    %c0_31 = arith.constant 0 : index
    %c0_32 = arith.constant 0 : index
    %53 = vector.load %arg4[%c1_30, %c0_31, %c0_32] : memref<10x14x160xbf16, #tpu.memory_space<vmem>>, vector<1x14x160xbf16>
    %54 = vector.shape_cast %53 : vector<1x14x160xbf16> to vector<14x160xbf16>
    %cst_33 = arith.constant dense<0.000000e+00> : vector<10x160xf32>
    %55 = tpu.matmul %52, %54, %cst_33 {dimension_numbers = #tpu.dot_dimension_numbers<[1], [0], [0], [1], [0, 0, 1, 1], [], []>} : vector<10x14xbf16>, vector<14x160xbf16>, vector<10x160xf32> -> vector<10x160xf32>
    %56 = arith.addf %50, %55 : vector<10x160xf32>
    %57 = vector.extract_strided_slice %45 {offsets = [2, 0], sizes = [10, 14], strides = [1, 1]} : vector<14x28xf32> to vector<10x14xf32>
    %58 = arith.truncf %57 : vector<10x14xf32> to vector<10x14xbf16>
    %c2_34 = arith.constant 2 : index
    %c0_35 = arith.constant 0 : index
    %c0_36 = arith.constant 0 : index
    %59 = vector.load %arg4[%c2_34, %c0_35, %c0_36] : memref<10x14x160xbf16, #tpu.memory_space<vmem>>, vector<1x14x160xbf16>
    %60 = vector.shape_cast %59 : vector<1x14x160xbf16> to vector<14x160xbf16>
    %cst_37 = arith.constant dense<0.000000e+00> : vector<10x160xf32>
    %61 = tpu.matmul %58, %60, %cst_37 {dimension_numbers = #tpu.dot_dimension_numbers<[1], [0], [0], [1], [0, 0, 1, 1], [], []>} : vector<10x14xbf16>, vector<14x160xbf16>, vector<10x160xf32> -> vector<10x160xf32>
    %62 = arith.addf %56, %61 : vector<10x160xf32>
    %63 = vector.extract_strided_slice %45 {offsets = [3, 0], sizes = [10, 14], strides = [1, 1]} : vector<14x28xf32> to vector<10x14xf32>
    %64 = arith.truncf %63 : vector<10x14xf32> to vector<10x14xbf16>
    %c3_38 = arith.constant 3 : index
    %c0_39 = arith.constant 0 : index
    %c0_40 = arith.constant 0 : index
    %65 = vector.load %arg4[%c3_38, %c0_39, %c0_40] : memref<10x14x160xbf16, #tpu.memory_space<vmem>>, vector<1x14x160xbf16>
    %66 = vector.shape_cast %65 : vector<1x14x160xbf16> to vector<14x160xbf16>
    %cst_41 = arith.constant dense<0.000000e+00> : vector<10x160xf32>
    %67 = tpu.matmul %64, %66, %cst_41 {dimension_numbers = #tpu.dot_dimension_numbers<[1], [0], [0], [1], [0, 0, 1, 1], [], []>} : vector<10x14xbf16>, vector<14x160xbf16>, vector<10x160xf32> -> vector<10x160xf32>
    %68 = arith.addf %62, %67 : vector<10x160xf32>
    %69 = vector.extract_strided_slice %45 {offsets = [4, 0], sizes = [10, 14], strides = [1, 1]} : vector<14x28xf32> to vector<10x14xf32>
    %70 = arith.truncf %69 : vector<10x14xf32> to vector<10x14xbf16>
    %c4_42 = arith.constant 4 : index
    %c0_43 = arith.constant 0 : index
    %c0_44 = arith.constant 0 : index
    %71 = vector.load %arg4[%c4_42, %c0_43, %c0_44] : memref<10x14x160xbf16, #tpu.memory_space<vmem>>, vector<1x14x160xbf16>
    %72 = vector.shape_cast %71 : vector<1x14x160xbf16> to vector<14x160xbf16>
    %cst_45 = arith.constant dense<0.000000e+00> : vector<10x160xf32>
    %73 = tpu.matmul %70, %72, %cst_45 {dimension_numbers = #tpu.dot_dimension_numbers<[1], [0], [0], [1], [0, 0, 1, 1], [], []>} : vector<10x14xbf16>, vector<14x160xbf16>, vector<10x160xf32> -> vector<10x160xf32>
    %74 = arith.addf %68, %73 : vector<10x160xf32>
    %75 = vector.extract_strided_slice %45 {offsets = [0, 14], sizes = [10, 14], strides = [1, 1]} : vector<14x28xf32> to vector<10x14xf32>
    %76 = arith.truncf %75 : vector<10x14xf32> to vector<10x14xbf16>
    %c5 = arith.constant 5 : index
    %c0_46 = arith.constant 0 : index
    %c0_47 = arith.constant 0 : index
    %77 = vector.load %arg4[%c5, %c0_46, %c0_47] : memref<10x14x160xbf16, #tpu.memory_space<vmem>>, vector<1x14x160xbf16>
    %78 = vector.shape_cast %77 : vector<1x14x160xbf16> to vector<14x160xbf16>
    %cst_48 = arith.constant dense<0.000000e+00> : vector<10x160xf32>
    %79 = tpu.matmul %76, %78, %cst_48 {dimension_numbers = #tpu.dot_dimension_numbers<[1], [0], [0], [1], [0, 0, 1, 1], [], []>} : vector<10x14xbf16>, vector<14x160xbf16>, vector<10x160xf32> -> vector<10x160xf32>
    %80 = arith.addf %74, %79 : vector<10x160xf32>
    %81 = vector.extract_strided_slice %45 {offsets = [1, 14], sizes = [10, 14], strides = [1, 1]} : vector<14x28xf32> to vector<10x14xf32>
    %82 = arith.truncf %81 : vector<10x14xf32> to vector<10x14xbf16>
    %c6 = arith.constant 6 : index
    %c0_49 = arith.constant 0 : index
    %c0_50 = arith.constant 0 : index
    %83 = vector.load %arg4[%c6, %c0_49, %c0_50] : memref<10x14x160xbf16, #tpu.memory_space<vmem>>, vector<1x14x160xbf16>
    %84 = vector.shape_cast %83 : vector<1x14x160xbf16> to vector<14x160xbf16>
    %cst_51 = arith.constant dense<0.000000e+00> : vector<10x160xf32>
    %85 = tpu.matmul %82, %84, %cst_51 {dimension_numbers = #tpu.dot_dimension_numbers<[1], [0], [0], [1], [0, 0, 1, 1], [], []>} : vector<10x14xbf16>, vector<14x160xbf16>, vector<10x160xf32> -> vector<10x160xf32>
    %86 = arith.addf %80, %85 : vector<10x160xf32>
    %87 = vector.extract_strided_slice %45 {offsets = [2, 14], sizes = [10, 14], strides = [1, 1]} : vector<14x28xf32> to vector<10x14xf32>
    %88 = arith.truncf %87 : vector<10x14xf32> to vector<10x14xbf16>
    %c7 = arith.constant 7 : index
    %c0_52 = arith.constant 0 : index
    %c0_53 = arith.constant 0 : index
    %89 = vector.load %arg4[%c7, %c0_52, %c0_53] : memref<10x14x160xbf16, #tpu.memory_space<vmem>>, vector<1x14x160xbf16>
    %90 = vector.shape_cast %89 : vector<1x14x160xbf16> to vector<14x160xbf16>
    %cst_54 = arith.constant dense<0.000000e+00> : vector<10x160xf32>
    %91 = tpu.matmul %88, %90, %cst_54 {dimension_numbers = #tpu.dot_dimension_numbers<[1], [0], [0], [1], [0, 0, 1, 1], [], []>} : vector<10x14xbf16>, vector<14x160xbf16>, vector<10x160xf32> -> vector<10x160xf32>
    %92 = arith.addf %86, %91 : vector<10x160xf32>
    %93 = vector.extract_strided_slice %45 {offsets = [3, 14], sizes = [10, 14], strides = [1, 1]} : vector<14x28xf32> to vector<10x14xf32>
    %94 = arith.truncf %93 : vector<10x14xf32> to vector<10x14xbf16>
    %c8 = arith.constant 8 : index
    %c0_55 = arith.constant 0 : index
    %c0_56 = arith.constant 0 : index
    %95 = vector.load %arg4[%c8, %c0_55, %c0_56] : memref<10x14x160xbf16, #tpu.memory_space<vmem>>, vector<1x14x160xbf16>
    %96 = vector.shape_cast %95 : vector<1x14x160xbf16> to vector<14x160xbf16>
    %cst_57 = arith.constant dense<0.000000e+00> : vector<10x160xf32>
    %97 = tpu.matmul %94, %96, %cst_57 {dimension_numbers = #tpu.dot_dimension_numbers<[1], [0], [0], [1], [0, 0, 1, 1], [], []>} : vector<10x14xbf16>, vector<14x160xbf16>, vector<10x160xf32> -> vector<10x160xf32>
    %98 = arith.addf %92, %97 : vector<10x160xf32>
    %99 = vector.extract_strided_slice %45 {offsets = [4, 14], sizes = [10, 14], strides = [1, 1]} : vector<14x28xf32> to vector<10x14xf32>
    %100 = arith.truncf %99 : vector<10x14xf32> to vector<10x14xbf16>
    %c9 = arith.constant 9 : index
    %c0_58 = arith.constant 0 : index
    %c0_59 = arith.constant 0 : index
    %101 = vector.load %arg4[%c9, %c0_58, %c0_59] : memref<10x14x160xbf16, #tpu.memory_space<vmem>>, vector<1x14x160xbf16>
    %102 = vector.shape_cast %101 : vector<1x14x160xbf16> to vector<14x160xbf16>
    %cst_60 = arith.constant dense<0.000000e+00> : vector<10x160xf32>
    %103 = tpu.matmul %100, %102, %cst_60 {dimension_numbers = #tpu.dot_dimension_numbers<[1], [0], [0], [1], [0, 0, 1, 1], [], []>} : vector<10x14xbf16>, vector<14x160xbf16>, vector<10x160xf32> -> vector<10x160xf32>
    %104 = arith.addf %98, %103 : vector<10x160xf32>
    %c0_61 = arith.constant 0 : index
    %c0_62 = arith.constant 0 : index
    %105 = vector.load %arg5[%c0_61, %c0_62] : memref<1x160xf32, #tpu.memory_space<vmem>>, vector<1x160xf32>
    %106 = vector.broadcast %105 : vector<1x160xf32> to vector<10x160xf32>
    %107 = arith.addf %104, %106 : vector<10x160xf32>
    %cst_63 = arith.constant 0.000000e+00 : f32
    %108 = vector.broadcast %cst_63 : f32 to vector<10x160xf32>
    %109 = arith.maximumf %107, %108 : vector<10x160xf32>
    %110 = vector.extract_strided_slice %109 {offsets = [0, 0], sizes = [10, 159], strides = [1, 1]} : vector<10x160xf32> to vector<10x159xf32>
    %111 = vector.extract_strided_slice %109 {offsets = [0, 1], sizes = [10, 159], strides = [1, 1]} : vector<10x160xf32> to vector<10x159xf32>
    %112 = arith.maximumf %110, %111 : vector<10x159xf32>
    %113 = vector.extract_strided_slice %112 {offsets = [0, 0], sizes = [9, 159], strides = [1, 1]} : vector<10x159xf32> to vector<9x159xf32>
    %114 = vector.extract_strided_slice %112 {offsets = [1, 0], sizes = [9, 159], strides = [1, 1]} : vector<10x159xf32> to vector<9x159xf32>
    %115 = arith.maximumf %113, %114 : vector<9x159xf32>
    %c0_64 = arith.constant 0 : index
    %c0_65 = arith.constant 0 : index
    %116 = vector.load %arg8[%c0_64, %c0_65] : memref<5x9xf32, #tpu.memory_space<vmem>>, vector<5x9xf32>
    %cst_66 = arith.constant dense<0.000000e+00> : vector<5x159xf32>
    %117 = tpu.matmul %116, %115, %cst_66 {dimension_numbers = #tpu.dot_dimension_numbers<[1], [0], [0], [1], [0, 0, 1, 1], [], []>} : vector<5x9xf32>, vector<9x159xf32>, vector<5x159xf32> -> vector<5x159xf32>
    %c0_67 = arith.constant 0 : index
    %c0_68 = arith.constant 0 : index
    %118 = vector.load %arg9[%c0_67, %c0_68] : memref<159x80xf32, #tpu.memory_space<vmem>>, vector<159x80xf32>
    %cst_69 = arith.constant dense<0.000000e+00> : vector<5x80xf32>
    %119 = tpu.matmul %117, %118, %cst_69 {dimension_numbers = #tpu.dot_dimension_numbers<[1], [0], [0], [1], [0, 0, 1, 1], [], []>} : vector<5x159xf32>, vector<159x80xf32>, vector<5x80xf32> -> vector<5x80xf32>
    %120 = vector.extract_strided_slice %119 {offsets = [0, 0], sizes = [1, 80], strides = [1, 1]} : vector<5x80xf32> to vector<1x80xf32>
    %121 = arith.truncf %120 : vector<1x80xf32> to vector<1x80xbf16>
    %c0_70 = arith.constant 0 : index
    %c0_71 = arith.constant 0 : index
    %c0_72 = arith.constant 0 : index
    %122 = vector.load %arg10[%c0_70, %c0_71, %c0_72] : memref<5x80x64xbf16, #tpu.memory_space<vmem>>, vector<1x80x64xbf16>
    %123 = vector.shape_cast %122 : vector<1x80x64xbf16> to vector<80x64xbf16>
    %cst_73 = arith.constant dense<0.000000e+00> : vector<1x64xf32>
    %124 = tpu.matmul %121, %123, %cst_73 {dimension_numbers = #tpu.dot_dimension_numbers<[1], [0], [0], [1], [0, 0, 1, 1], [], []>} : vector<1x80xbf16>, vector<80x64xbf16>, vector<1x64xf32> -> vector<1x64xf32>
    %125 = vector.extract_strided_slice %119 {offsets = [1, 0], sizes = [1, 80], strides = [1, 1]} : vector<5x80xf32> to vector<1x80xf32>
    %126 = arith.truncf %125 : vector<1x80xf32> to vector<1x80xbf16>
    %c1_74 = arith.constant 1 : index
    %c0_75 = arith.constant 0 : index
    %c0_76 = arith.constant 0 : index
    %127 = vector.load %arg10[%c1_74, %c0_75, %c0_76] : memref<5x80x64xbf16, #tpu.memory_space<vmem>>, vector<1x80x64xbf16>
    %128 = vector.shape_cast %127 : vector<1x80x64xbf16> to vector<80x64xbf16>
    %cst_77 = arith.constant dense<0.000000e+00> : vector<1x64xf32>
    %129 = tpu.matmul %126, %128, %cst_77 {dimension_numbers = #tpu.dot_dimension_numbers<[1], [0], [0], [1], [0, 0, 1, 1], [], []>} : vector<1x80xbf16>, vector<80x64xbf16>, vector<1x64xf32> -> vector<1x64xf32>
    %130 = arith.addf %124, %129 : vector<1x64xf32>
    %131 = vector.extract_strided_slice %119 {offsets = [2, 0], sizes = [1, 80], strides = [1, 1]} : vector<5x80xf32> to vector<1x80xf32>
    %132 = arith.truncf %131 : vector<1x80xf32> to vector<1x80xbf16>
    %c2_78 = arith.constant 2 : index
    %c0_79 = arith.constant 0 : index
    %c0_80 = arith.constant 0 : index
    %133 = vector.load %arg10[%c2_78, %c0_79, %c0_80] : memref<5x80x64xbf16, #tpu.memory_space<vmem>>, vector<1x80x64xbf16>
    %134 = vector.shape_cast %133 : vector<1x80x64xbf16> to vector<80x64xbf16>
    %cst_81 = arith.constant dense<0.000000e+00> : vector<1x64xf32>
    %135 = tpu.matmul %132, %134, %cst_81 {dimension_numbers = #tpu.dot_dimension_numbers<[1], [0], [0], [1], [0, 0, 1, 1], [], []>} : vector<1x80xbf16>, vector<80x64xbf16>, vector<1x64xf32> -> vector<1x64xf32>
    %136 = arith.addf %130, %135 : vector<1x64xf32>
    %137 = vector.extract_strided_slice %119 {offsets = [3, 0], sizes = [1, 80], strides = [1, 1]} : vector<5x80xf32> to vector<1x80xf32>
    %138 = arith.truncf %137 : vector<1x80xf32> to vector<1x80xbf16>
    %c3_82 = arith.constant 3 : index
    %c0_83 = arith.constant 0 : index
    %c0_84 = arith.constant 0 : index
    %139 = vector.load %arg10[%c3_82, %c0_83, %c0_84] : memref<5x80x64xbf16, #tpu.memory_space<vmem>>, vector<1x80x64xbf16>
    %140 = vector.shape_cast %139 : vector<1x80x64xbf16> to vector<80x64xbf16>
    %cst_85 = arith.constant dense<0.000000e+00> : vector<1x64xf32>
    %141 = tpu.matmul %138, %140, %cst_85 {dimension_numbers = #tpu.dot_dimension_numbers<[1], [0], [0], [1], [0, 0, 1, 1], [], []>} : vector<1x80xbf16>, vector<80x64xbf16>, vector<1x64xf32> -> vector<1x64xf32>
    %142 = arith.addf %136, %141 : vector<1x64xf32>
    %143 = vector.extract_strided_slice %119 {offsets = [4, 0], sizes = [1, 80], strides = [1, 1]} : vector<5x80xf32> to vector<1x80xf32>
    %144 = arith.truncf %143 : vector<1x80xf32> to vector<1x80xbf16>
    %c4_86 = arith.constant 4 : index
    %c0_87 = arith.constant 0 : index
    %c0_88 = arith.constant 0 : index
    %145 = vector.load %arg10[%c4_86, %c0_87, %c0_88] : memref<5x80x64xbf16, #tpu.memory_space<vmem>>, vector<1x80x64xbf16>
    %146 = vector.shape_cast %145 : vector<1x80x64xbf16> to vector<80x64xbf16>
    %cst_89 = arith.constant dense<0.000000e+00> : vector<1x64xf32>
    %147 = tpu.matmul %144, %146, %cst_89 {dimension_numbers = #tpu.dot_dimension_numbers<[1], [0], [0], [1], [0, 0, 1, 1], [], []>} : vector<1x80xbf16>, vector<80x64xbf16>, vector<1x64xf32> -> vector<1x64xf32>
    %148 = arith.addf %142, %147 : vector<1x64xf32>
    %c0_90 = arith.constant 0 : index
    %c0_91 = arith.constant 0 : index
    %149 = vector.load %arg11[%c0_90, %c0_91] : memref<1x64xf32, #tpu.memory_space<vmem>>, vector<1x64xf32>
    %150 = arith.addf %148, %149 : vector<1x64xf32>
    %cst_92 = arith.constant 0.000000e+00 : f32
    %151 = vector.broadcast %cst_92 : f32 to vector<1x64xf32>
    %152 = arith.maximumf %150, %151 : vector<1x64xf32>
    %153 = arith.truncf %152 : vector<1x64xf32> to vector<1x64xbf16>
    %c0_93 = arith.constant 0 : index
    %c0_94 = arith.constant 0 : index
    %154 = vector.load %arg12[%c0_93, %c0_94] : memref<64x10xbf16, #tpu.memory_space<vmem>>, vector<64x10xbf16>
    %cst_95 = arith.constant dense<0.000000e+00> : vector<1x10xf32>
    %155 = tpu.matmul %153, %154, %cst_95 {dimension_numbers = #tpu.dot_dimension_numbers<[1], [0], [0], [1], [0, 0, 1, 1], [], []>} : vector<1x64xbf16>, vector<64x10xbf16>, vector<1x10xf32> -> vector<1x10xf32>
    %c0_96 = arith.constant 0 : index
    %c0_97 = arith.constant 0 : index
    %156 = vector.load %arg13[%c0_96, %c0_97] : memref<1x10xf32, #tpu.memory_space<vmem>>, vector<1x10xf32>
    %157 = arith.addf %155, %156 : vector<1x10xf32>
    %cst_98 = arith.constant dense<0.000000e+00> : vector<1xf32>
    %158 = vector.multi_reduction <add>, %157, %cst_98 [1] : vector<1x10xf32> to vector<1xf32>
    %159 = vector.shape_cast %158 : vector<1xf32> to vector<1x1xf32>
    %cst_99 = arith.constant 1.000000e-01 : f32
    %160 = vector.broadcast %cst_99 : f32 to vector<1x1xf32>
    %161 = arith.mulf %159, %160 : vector<1x1xf32>
    %162 = math.tanh %161 : vector<1x1xf32>
    %c0_100 = arith.constant 0 : index
    %c0_101 = arith.constant 0 : index
    %163 = vector.load %arg14[%c0_100, %c0_101] : memref<1x10xf32, #tpu.memory_space<vmem>>, vector<1x10xf32>
    %164 = vector.broadcast %162 : vector<1x1xf32> to vector<1x10xf32>
    %165 = arith.mulf %164, %163 : vector<1x10xf32>
    %c0_102 = arith.constant 0 : index
    %c0_103 = arith.constant 0 : index
    %166 = vector.load %arg15[%c0_102, %c0_103] : memref<1x10xf32, #tpu.memory_space<vmem>>, vector<1x10xf32>
    %167 = arith.addf %165, %166 : vector<1x10xf32>
    %c0_104 = arith.constant 0 : index
    %c0_105 = arith.constant 0 : index
    %c0_106 = arith.constant 0 : index
    %168 = vector.load %arg16[%c0_104, %c0_105, %c0_106] : memref<1x1x10xf32, #tpu.memory_space<vmem>>, vector<1x1x10xf32>
    %169 = vector.shape_cast %168 : vector<1x1x10xf32> to vector<1x10xf32>
    %170 = vector.shape_cast %167 : vector<1x10xf32> to vector<1x1x10xf32>
    tpu.vector_store %arg16[%c0_104, %c0_105, %c0_106], %170 {strides = array<i32>} : memref<1x1x10xf32, #tpu.memory_space<vmem>>, vector<1x1x10xf32>,
    return
  }
  func.func @transform_0(%arg0: i32) -> (i32, i32, i32) {
    %c0_i32 = arith.constant 0 : i32
    %c0_i32_0 = arith.constant 0 : i32
    %c0_i32_1 = arith.constant 0 : i32
    return %arg0, %c0_i32, %c0_i32_0 : i32, i32, i32
  }
  func.func @transform_1(%arg0: i32) -> (i32, i32, i32) {
    %c0_i32 = arith.constant 0 : i32
    %c0_i32_0 = arith.constant 0 : i32
    %c0_i32_1 = arith.constant 0 : i32
    %c0_i32_2 = arith.constant 0 : i32
    return %c0_i32, %c0_i32_0, %c0_i32_1 : i32, i32, i32
  }
  func.func @transform_2(%arg0: i32) -> (i32, i32) {
    %c0_i32 = arith.constant 0 : i32
    %c0_i32_0 = arith.constant 0 : i32
    %c0_i32_1 = arith.constant 0 : i32
    return %c0_i32, %c0_i32_0 : i32, i32
  }
  func.func @transform_3(%arg0: i32) -> (i32, i32, i32) {
    %c0_i32 = arith.constant 0 : i32
    %c0_i32_0 = arith.constant 0 : i32
    %c0_i32_1 = arith.constant 0 : i32
    %c0_i32_2 = arith.constant 0 : i32
    return %c0_i32, %c0_i32_0, %c0_i32_1 : i32, i32, i32
  }
  func.func @transform_4(%arg0: i32) -> (i32, i32) {
    %c0_i32 = arith.constant 0 : i32
    %c0_i32_0 = arith.constant 0 : i32
    %c0_i32_1 = arith.constant 0 : i32
    return %c0_i32, %c0_i32_0 : i32, i32
  }
  func.func @transform_5(%arg0: i32) -> (i32, i32) {
    %c0_i32 = arith.constant 0 : i32
    %c0_i32_0 = arith.constant 0 : i32
    %c0_i32_1 = arith.constant 0 : i32
    return %c0_i32, %c0_i32_0 : i32, i32
  }
  func.func @transform_6(%arg0: i32) -> (i32, i32) {
    %c0_i32 = arith.constant 0 : i32
    %c0_i32_0 = arith.constant 0 : i32
    %c0_i32_1 = arith.constant 0 : i32
    return %c0_i32, %c0_i32_0 : i32, i32
  }
  func.func @transform_7(%arg0: i32) -> (i32, i32) {
    %c0_i32 = arith.constant 0 : i32
    %c0_i32_0 = arith.constant 0 : i32
    %c0_i32_1 = arith.constant 0 : i32
    return %c0_i32, %c0_i32_0 : i32, i32
  }
  func.func @transform_8(%arg0: i32) -> (i32, i32) {
    %c0_i32 = arith.constant 0 : i32
    %c0_i32_0 = arith.constant 0 : i32
    %c0_i32_1 = arith.constant 0 : i32
    return %c0_i32, %c0_i32_0 : i32, i32
  }
  func.func @transform_9(%arg0: i32) -> (i32, i32, i32) {
    %c0_i32 = arith.constant 0 : i32
    %c0_i32_0 = arith.constant 0 : i32
    %c0_i32_1 = arith.constant 0 : i32
    %c0_i32_2 = arith.constant 0 : i32
    return %c0_i32, %c0_i32_0, %c0_i32_1 : i32, i32, i32
  }
  func.func @transform_10(%arg0: i32) -> (i32, i32) {
    %c0_i32 = arith.constant 0 : i32
    %c0_i32_0 = arith.constant 0 : i32
    %c0_i32_1 = arith.constant 0 : i32
    return %c0_i32, %c0_i32_0 : i32, i32
  }
  func.func @transform_11(%arg0: i32) -> (i32, i32) {
    %c0_i32 = arith.constant 0 : i32
    %c0_i32_0 = arith.constant 0 : i32
    %c0_i32_1 = arith.constant 0 : i32
    return %c0_i32, %c0_i32_0 : i32, i32
  }
  func.func @transform_12(%arg0: i32) -> (i32, i32) {
    %c0_i32 = arith.constant 0 : i32
    %c0_i32_0 = arith.constant 0 : i32
    %c0_i32_1 = arith.constant 0 : i32
    return %c0_i32, %c0_i32_0 : i32, i32
  }
  func.func @transform_13(%arg0: i32) -> (i32, i32) {
    %c0_i32 = arith.constant 0 : i32
    %c0_i32_0 = arith.constant 0 : i32
    %c0_i32_1 = arith.constant 0 : i32
    return %c0_i32, %c0_i32_0 : i32, i32
  }
  func.func @transform_14(%arg0: i32) -> (i32, i32) {
    %c0_i32 = arith.constant 0 : i32
    %c0_i32_0 = arith.constant 0 : i32
    %c0_i32_1 = arith.constant 0 : i32
    return %c0_i32, %c0_i32_0 : i32, i32
  }
  func.func @transform_15(%arg0: i32) -> (i32, i32, i32) {
    %c0_i32 = arith.constant 0 : i32
    %c0_i32_0 = arith.constant 0 : i32
    %c0_i32_1 = arith.constant 0 : i32
    return %arg0, %c0_i32, %c0_i32_0 : i32, i32, i32
  }
}

</mosaic_0001>

<llo_original>
// kernel: net_forward.1
$region0: #{net_forward.1}
  #allocation0 [shape = 'u32[]', space=smem, size = 0x4, offset = 0x4, fixed_abs, tag = 'smem constant byte address 0x4 - core index']
  #allocation1 [shape = 'u32[144,128]{1,0:T(1,128)}', space=vmem, size = 0x12000, scoped, tag = 'internal scratch']
  %s0 = inlined_call_operand.vmem [shape: f32[2,32,32], index: 0, kind: input, shape index: {}]
  %s1 = inlined_call_operand.vmem [shape: bf16[5,32,56], index: 1, kind: input, shape index: {}]
  %s2 = inlined_call_operand.vmem [shape: f32[1,56], index: 2, kind: input, shape index: {}]
  %s3 = inlined_call_operand.vmem [shape: bf16[10,14,160], index: 3, kind: input, shape index: {}]
  %s4 = inlined_call_operand.vmem [shape: f32[1,160], index: 4, kind: input, shape index: {}]
  %s5 = inlined_call_operand.vmem [shape: f32[14,27], index: 5, kind: input, shape index: {}]
  %s6 = inlined_call_operand.vmem [shape: f32[55,28], index: 6, kind: input, shape index: {}]
  %s7 = inlined_call_operand.vmem [shape: f32[5,9], index: 7, kind: input, shape index: {}]
  %s8 = inlined_call_operand.vmem [shape: f32[159,80], index: 8, kind: input, shape index: {}]
  %s9 = inlined_call_operand.vmem [shape: bf16[5,80,64], index: 9, kind: input, shape index: {}]
  %s10 = inlined_call_operand.vmem [shape: f32[1,64], index: 10, kind: input, shape index: {}]
  %s11 = inlined_call_operand.vmem [shape: bf16[64,10], index: 11, kind: input, shape index: {}]
  %s12 = inlined_call_operand.vmem [shape: f32[1,10], index: 12, kind: input, shape index: {}]
  %s13 = inlined_call_operand.vmem [shape: f32[1,10], index: 13, kind: input, shape index: {}]
  %s14 = inlined_call_operand.vmem [shape: f32[1,10], index: 14, kind: input, shape index: {}]
  %s15 = inlined_call_operand.hbm [shape: f32[2,1,10], index: 15, kind: output, shape index: {}]
  %s16 = sld [smem:[#allocation0]]
  $region93: #{net_forward.1} parent=0
    _
  %s18 = ssub.s32 1, %s16
  %s19 = scalar_select 0, %s18, %s16
  $region1: #{net_forward.1} parent=0
    #allocation2 [shape = 'u8[1024]{0}', space=vmem, size = 0x400, scoped, tag = 'output window, operand 0']
    #allocation3 [shape = 's32[2]{0}', space=sflag, size = 0x8, scoped, tag = 'scoped memory for net_forward.1']
    %20 = vsyncpa [#allocation3], 0
    %s21 = scalar_lea.sflag [#allocation3], 1
    %22 = vsyncpa %s21, 0
    loop: start=0, step=1, limit=4
    $region2: #{net_forward.1} parent=1 // loop_pre_header
      _
    $region3: #{net_forward.1} parent=1 // loop_header
      %s24 = sphi 0, %s28
      %p25 = scmp.ge.s32.totalorder %s24, 4
      %s34 = sphi 0, %s36
      %s37 = sphi 0, %s34
      %s38 = sphi 0, %s37
      %s54 = sphi 0, %s38
      %s58 = sphi 0, %s58
      %s60 = sphi 0, %s58
      %s61 = sphi 0, %s60
      %s75 = sphi 0, %s61
      %s79 = sphi 0, %s79
      %s81 = sphi 0, %s79
      %s82 = sphi 0, %s81
      %s96 = sphi 0, %s82
      %s100 = sphi 0, %s100
      %s102 = sphi 0, %s100
      %s103 = sphi 0, %s102
      %s117 = sphi 0, %s103
      %s121 = sphi 0, %s121
      %s123 = sphi 0, %s121
      %s124 = sphi 0, %s123
      %s138 = sphi 0, %s124
      %s142 = sphi 0, %s142
      %s144 = sphi 0, %s142
      %s145 = sphi 0, %s144
      %s159 = sphi 0, %s145
      %s163 = sphi 0, %s163
      %s165 = sphi 0, %s163
      %s166 = sphi 0, %s165
      %s180 = sphi 0, %s166
      %s184 = sphi 0, %s184
      %s186 = sphi 0, %s184
      %s187 = sphi 0, %s186
      %s201 = sphi 0, %s187
      %s205 = sphi 0, %s205
      %s207 = sphi 0, %s205
      %s208 = sphi 0, %s207
      %s222 = sphi 0, %s208
      %s226 = sphi 0, %s226
      %s228 = sphi 0, %s226
      %s229 = sphi 0, %s228
      %s243 = sphi 0, %s229
      %s247 = sphi 0, %s247
      %s249 = sphi 0, %s247
      %s250 = sphi 0, %s249
      %s264 = sphi 0, %s250
      %s268 = sphi 0, %s268
      %s270 = sphi 0, %s268
      %s271 = sphi 0, %s270
      %s285 = sphi 0, %s271
      %s289 = sphi 0, %s289
      %s291 = sphi 0, %s289
      %s292 = sphi 0, %s291
      %s306 = sphi 0, %s292
      %s310 = sphi 0, %s310
      %s312 = sphi 0, %s310
      %s313 = sphi 0, %s312
      %s327 = sphi 0, %s313
      %s331 = sphi 0, %s331
      %s333 = sphi 0, %s331
      %s334 = sphi 0, %s333
      %s348 = sphi 0, %s334
      %s354 = sphi 0, %s356
      %s357 = sphi 0, %s354
      %s358 = sphi 0, %s357
      %s374 = sphi 0, %s358
    $region4: #{net_forward.1} parent=1 // loop_header_branch
      %27 = sbr.rel (%p25) target = $region8
    $region5: #{net_forward.1} parent=1 // loop_body
      %s29 = ssub.s32 %s24, 1
      %s30 = ssub.s32 %s24, 2
      %s31 = sadd.s32 %s24, 1
      %s32 = ssub.s32 %s24, %s31
      %p33 = scmp.eq.s32.totalorder %s32, 0
      %s35 = sadd.s32 %s34, 1
      %s36 = scalar_select %p33, %s34, %s35
      %p39 = pneg %p33
      %p40 = scmp.eq.s32.totalorder %s24, 1
      %p41 = por %p39, %p40
      %p42 = scmp.ne.s32.totalorder %s34, %s37
      %p43 = scmp.eq.s32.totalorder %s24, 0
      %p44 = por %p42, %p43
      %p45 = scmp.ne.s32.totalorder %s34, %s37
      %p46 = scmp.eq.s32.totalorder %s29, 1
      %p47 = por %p45, %p46
      %p48 = scmp.ne.s32.totalorder %s37, %s38
      %p49 = scmp.eq.s32.totalorder %s29, 0
      %p50 = por %p48, %p49
      %p51 = scmp.ne.s32.totalorder %s37, %s38
      %p52 = scmp.eq.s32.totalorder %s30, 1
      %p53 = por %p51, %p52
      %p55 = scmp.ne.s32.totalorder %s38, %s54
      %p56 = scmp.eq.s32.totalorder %s30, 0
      %p57 = por %p55, %p56
      %s59 = sadd.s32 %s58, 1
      %p62 = scmp.eq.s32.totalorder %s24, 1
      %p63 = scmp.ne.s32.totalorder %s58, %s60
      %p64 = scmp.eq.s32.totalorder %s24, 0
      %p65 = por %p63, %p64
      %p66 = scmp.ne.s32.totalorder %s58, %s60
      %p67 = scmp.eq.s32.totalorder %s29, 1
      %p68 = por %p66, %p67
      %p69 = scmp.ne.s32.totalorder %s60, %s61
      %p70 = scmp.eq.s32.totalorder %s29, 0
      %p71 = por %p69, %p70
      %p72 = scmp.ne.s32.totalorder %s60, %s61
      %p73 = scmp.eq.s32.totalorder %s30, 1
      %p74 = por %p72, %p73
      %p76 = scmp.ne.s32.totalorder %s61, %s75
      %p77 = scmp.eq.s32.totalorder %s30, 0
      %p78 = por %p76, %p77
      %s80 = sadd.s32 %s79, 1
      %p83 = scmp.eq.s32.totalorder %s24, 1
      %p84 = scmp.ne.s32.totalorder %s79, %s81
      %p85 = scmp.eq.s32.totalorder %s24, 0
      %p86 = por %p84, %p85
      %p87 = scmp.ne.s32.totalorder %s79, %s81
      %p88 = scmp.eq.s32.totalorder %s29, 1
      %p89 = por %p87, %p88
      %p90 = scmp.ne.s32.totalorder %s81, %s82
      %p91 = scmp.eq.s32.totalorder %s29, 0
      %p92 = por %p90, %p91
      %p93 = scmp.ne.s32.totalorder %s81, %s82
      %p94 = scmp.eq.s32.totalorder %s30, 1
      %p95 = por %p93, %p94
      %p97 = scmp.ne.s32.totalorder %s82, %s96
      %p98 = scmp.eq.s32.totalorder %s30, 0
      %p99 = por %p97, %p98
      %s101 = sadd.s32 %s100, 1
      %p104 = scmp.eq.s32.totalorder %s24, 1
      %p105 = scmp.ne.s32.totalorder %s100, %s102
      %p106 = scmp.eq.s32.totalorder %s24, 0
      %p107 = por %p105, %p106
      %p108 = scmp.ne.s32.totalorder %s100, %s102
      %p109 = scmp.eq.s32.totalorder %s29, 1
      %p110 = por %p108, %p109
      %p111 = scmp.ne.s32.totalorder %s102, %s103
      %p112 = scmp.eq.s32.totalorder %s29, 0
      %p113 = por %p111, %p112
      %p114 = scmp.ne.s32.totalorder %s102, %s103
      %p115 = scmp.eq.s32.totalorder %s30, 1
      %p116 = por %p114, %p115
      %p118 = scmp.ne.s32.totalorder %s103, %s117
      %p119 = scmp.eq.s32.totalorder %s30, 0
      %p120 = por %p118, %p119
      %s122 = sadd.s32 %s121, 1
      %p125 = scmp.eq.s32.totalorder %s24, 1
      %p126 = scmp.ne.s32.totalorder %s121, %s123
      %p127 = scmp.eq.s32.totalorder %s24, 0
      %p128 = por %p126, %p127
      %p129 = scmp.ne.s32.totalorder %s121, %s123
      %p130 = scmp.eq.s32.totalorder %s29, 1
      %p131 = por %p129, %p130
      %p132 = scmp.ne.s32.totalorder %s123, %s124
      %p133 = scmp.eq.s32.totalorder %s29, 0
      %p134 = por %p132, %p133
      %p135 = scmp.ne.s32.totalorder %s123, %s124
      %p136 = scmp.eq.s32.totalorder %s30, 1
      %p137 = por %p135, %p136
      %p139 = scmp.ne.s32.totalorder %s124, %s138
      %p140 = scmp.eq.s32.totalorder %s30, 0
      %p141 = por %p139, %p140
      %s143 = sadd.s32 %s142, 1
      %p146 = scmp.eq.s32.totalorder %s24, 1
      %p147 = scmp.ne.s32.totalorder %s142, %s144
      %p148 = scmp.eq.s32.totalorder %s24, 0
      %p149 = por %p147, %p148
      %p150 = scmp.ne.s32.totalorder %s142, %s144
      %p151 = scmp.eq.s32.totalorder %s29, 1
      %p152 = por %p150, %p151
      %p153 = scmp.ne.s32.totalorder %s144, %s145
      %p154 = scmp.eq.s32.totalorder %s29, 0
      %p155 = por %p153, %p154
      %p156 = scmp.ne.s32.totalorder %s144, %s145
      %p157 = scmp.eq.s32.totalorder %s30, 1
      %p158 = por %p156, %p157
      %p160 = scmp.ne.s32.totalorder %s145, %s159
      %p161 = scmp.eq.s32.totalorder %s30, 0
      %p162 = por %p160, %p161
      %s164 = sadd.s32 %s163, 1
      %p167 = scmp.eq.s32.totalorder %s24, 1
      %p168 = scmp.ne.s32.totalorder %s163, %s165
      %p169 = scmp.eq.s32.totalorder %s24, 0
      %p170 = por %p168, %p169
      %p171 = scmp.ne.s32.totalorder %s163, %s165
      %p172 = scmp.eq.s32.totalorder %s29, 1
      %p173 = por %p171, %p172
      %p174 = scmp.ne.s32.totalorder %s165, %s166
      %p175 = scmp.eq.s32.totalorder %s29, 0
      %p176 = por %p174, %p175
      %p177 = scmp.ne.s32.totalorder %s165, %s166
      %p178 = scmp.eq.s32.totalorder %s30, 1
      %p179 = por %p177, %p178
      %p181 = scmp.ne.s32.totalorder %s166, %s180
      %p182 = scmp.eq.s32.totalorder %s30, 0
      %p183 = por %p181, %p182
      %s185 = sadd.s32 %s184, 1
      %p188 = scmp.eq.s32.totalorder %s24, 1
      %p189 = scmp.ne.s32.totalorder %s184, %s186
      %p190 = scmp.eq.s32.totalorder %s24, 0
      %p191 = por %p189, %p190
      %p192 = scmp.ne.s32.totalorder %s184, %s186
      %p193 = scmp.eq.s32.totalorder %s29, 1
      %p194 = por %p192, %p193
      %p195 = scmp.ne.s32.totalorder %s186, %s187
      %p196 = scmp.eq.s32.totalorder %s29, 0
      %p197 = por %p195, %p196
      %p198 = scmp.ne.s32.totalorder %s186, %s187
      %p199 = scmp.eq.s32.totalorder %s30, 1
      %p200 = por %p198, %p199
      %p202 = scmp.ne.s32.totalorder %s187, %s201
      %p203 = scmp.eq.s32.totalorder %s30, 0
      %p204 = por %p202, %p203
      %s206 = sadd.s32 %s205, 1
      %p209 = scmp.eq.s32.totalorder %s24, 1
      %p210 = scmp.ne.s32.totalorder %s205, %s207
      %p211 = scmp.eq.s32.totalorder %s24, 0
      %p212 = por %p210, %p211
      %p213 = scmp.ne.s32.totalorder %s205, %s207
      %p214 = scmp.eq.s32.totalorder %s29, 1
      %p215 = por %p213, %p214
      %p216 = scmp.ne.s32.totalorder %s207, %s208
      %p217 = scmp.eq.s32.totalorder %s29, 0
      %p218 = por %p216, %p217
      %p219 = scmp.ne.s32.totalorder %s207, %s208
      %p220 = scmp.eq.s32.totalorder %s30, 1
      %p221 = por %p219, %p220
      %p223 = scmp.ne.s32.totalorder %s208, %s222
      %p224 = scmp.eq.s32.totalorder %s30, 0
      %p225 = por %p223, %p224
      %s227 = sadd.s32 %s226, 1
      %p230 = scmp.eq.s32.totalorder %s24, 1
      %p231 = scmp.ne.s32.totalorder %s226, %s228
      %p232 = scmp.eq.s32.totalorder %s24, 0
      %p233 = por %p231, %p232
      %p234 = scmp.ne.s32.totalorder %s226, %s228
      %p235 = scmp.eq.s32.totalorder %s29, 1
      %p236 = por %p234, %p235
      %p237 = scmp.ne.s32.totalorder %s228, %s229
      %p238 = scmp.eq.s32.totalorder %s29, 0
      %p239 = por %p237, %p238
      %p240 = scmp.ne.s32.totalorder %s228, %s229
      %p241 = scmp.eq.s32.totalorder %s30, 1
      %p242 = por %p240, %p241
      %p244 = scmp.ne.s32.totalorder %s229, %s243
      %p245 = scmp.eq.s32.totalorder %s30, 0
      %p246 = por %p244, %p245
      %s248 = sadd.s32 %s247, 1
      %p251 = scmp.eq.s32.totalorder %s24, 1
      %p252 = scmp.ne.s32.totalorder %s247, %s249
      %p253 = scmp.eq.s32.totalorder %s24, 0
      %p254 = por %p252, %p253
      %p255 = scmp.ne.s32.totalorder %s247, %s249
      %p256 = scmp.eq.s32.totalorder %s29, 1
      %p257 = por %p255, %p256
      %p258 = scmp.ne.s32.totalorder %s249, %s250
      %p259 = scmp.eq.s32.totalorder %s29, 0
      %p260 = por %p258, %p259
      %p261 = scmp.ne.s32.totalorder %s249, %s250
      %p262 = scmp.eq.s32.totalorder %s30, 1
      %p263 = por %p261, %p262
      %p265 = scmp.ne.s32.totalorder %s250, %s264
      %p266 = scmp.eq.s32.totalorder %s30, 0
      %p267 = por %p265, %p266
      %s269 = sadd.s32 %s268, 1
      %p272 = scmp.eq.s32.totalorder %s24, 1
      %p273 = scmp.ne.s32.totalorder %s268, %s270
      %p274 = scmp.eq.s32.totalorder %s24, 0
      %p275 = por %p273, %p274
      %p276 = scmp.ne.s32.totalorder %s268, %s270
      %p277 = scmp.eq.s32.totalorder %s29, 1
      %p278 = por %p276, %p277
      %p279 = scmp.ne.s32.totalorder %s270, %s271
      %p280 = scmp.eq.s32.totalorder %s29, 0
      %p281 = por %p279, %p280
      %p282 = scmp.ne.s32.totalorder %s270, %s271
      %p283 = scmp.eq.s32.totalorder %s30, 1
      %p284 = por %p282, %p283
      %p286 = scmp.ne.s32.totalorder %s271, %s285
      %p287 = scmp.eq.s32.totalorder %s30, 0
      %p288 = por %p286, %p287
      %s290 = sadd.s32 %s289, 1
      %p293 = scmp.eq.s32.totalorder %s24, 1
      %p294 = scmp.ne.s32.totalorder %s289, %s291
      %p295 = scmp.eq.s32.totalorder %s24, 0
      %p296 = por %p294, %p295
      %p297 = scmp.ne.s32.totalorder %s289, %s291
      %p298 = scmp.eq.s32.totalorder %s29, 1
      %p299 = por %p297, %p298
      %p300 = scmp.ne.s32.totalorder %s291, %s292
      %p301 = scmp.eq.s32.totalorder %s29, 0
      %p302 = por %p300, %p301
      %p303 = scmp.ne.s32.totalorder %s291, %s292
      %p304 = scmp.eq.s32.totalorder %s30, 1
      %p305 = por %p303, %p304
      %p307 = scmp.ne.s32.totalorder %s292, %s306
      %p308 = scmp.eq.s32.totalorder %s30, 0
      %p309 = por %p307, %p308
      %s311 = sadd.s32 %s310, 1
      %p314 = scmp.eq.s32.totalorder %s24, 1
      %p315 = scmp.ne.s32.totalorder %s310, %s312
      %p316 = scmp.eq.s32.totalorder %s24, 0
      %p317 = por %p315, %p316
      %p318 = scmp.ne.s32.totalorder %s310, %s312
      %p319 = scmp.eq.s32.totalorder %s29, 1
      %p320 = por %p318, %p319
      %p321 = scmp.ne.s32.totalorder %s312, %s313
      %p322 = scmp.eq.s32.totalorder %s29, 0
      %p323 = por %p321, %p322
      %p324 = scmp.ne.s32.totalorder %s312, %s313
      %p325 = scmp.eq.s32.totalorder %s30, 1
      %p326 = por %p324, %p325
      %p328 = scmp.ne.s32.totalorder %s313, %s327
      %p329 = scmp.eq.s32.totalorder %s30, 0
      %p330 = por %p328, %p329
      %s332 = sadd.s32 %s331, 1
      %p335 = scmp.eq.s32.totalorder %s24, 1
      %p336 = scmp.ne.s32.totalorder %s331, %s333
      %p337 = scmp.eq.s32.totalorder %s24, 0
      %p338 = por %p336, %p337
      %p339 = scmp.ne.s32.totalorder %s331, %s333
      %p340 = scmp.eq.s32.totalorder %s29, 1
      %p341 = por %p339, %p340
      %p342 = scmp.ne.s32.totalorder %s333, %s334
      %p343 = scmp.eq.s32.totalorder %s29, 0
      %p344 = por %p342, %p343
      %p345 = scmp.ne.s32.totalorder %s333, %s334
      %p346 = scmp.eq.s32.totalorder %s30, 1
      %p347 = por %p345, %p346
      %p349 = scmp.ne.s32.totalorder %s334, %s348
      %p350 = scmp.eq.s32.totalorder %s30, 0
      %p351 = por %p349, %p350
      %s352 = ssub.s32 %s24, %s31
      %p353 = scmp.eq.s32.totalorder %s352, 0
      %s355 = sadd.s32 %s354, 1
      %s356 = scalar_select %p353, %s354, %s355
      %p359 = pneg %p353
      %p360 = scmp.eq.s32.totalorder %s24, 1
      %p361 = por %p359, %p360
      %p362 = scmp.ne.s32.totalorder %s354, %s357
      %p363 = scmp.eq.s32.totalorder %s24, 0
      %p364 = por %p362, %p363
      %p365 = scmp.ne.s32.totalorder %s354, %s357
      %p366 = scmp.eq.s32.totalorder %s29, 1
      %p367 = por %p365, %p366
      %p368 = scmp.ne.s32.totalorder %s357, %s358
      %p369 = scmp.eq.s32.totalorder %s29, 0
      %p370 = por %p368, %p369
      %p371 = scmp.ne.s32.totalorder %s357, %s358
      %p372 = scmp.eq.s32.totalorder %s30, 1
      %p373 = por %p371, %p372
      %p375 = scmp.ne.s32.totalorder %s358, %s374
      %p376 = scmp.eq.s32.totalorder %s30, 0
      %p377 = por %p375, %p376
      %p378 = scmp.le.s32.totalorder 1, %s24
      %p379 = scmp.lt.s32.totalorder %s24, 3
      %p380 = pnand %p378, %p379
      %p381 = pneg %p380
      // Predicated region
      $region9: #{net_forward.1} parent=5 // pred_check
        _
      $region10: #{net_forward.1} parent=5 // pred_check_branch
        %383 = sbr.rel (%p380) target = $region12
      $region11: #{net_forward.1} parent=5 // pred_region
        %s384 = ssub.s32 %s24, 1
        // Predicated region
        $region13: #{net_forward.1} parent=11 // pred_check
          %p385 = pneg %p71
        $region14: #{net_forward.1} parent=11 // pred_check_branch
          %387 = sbr.rel (%p385) target = $region16
        $region15: #{net_forward.1} parent=11 // pred_region
          _
        $region16: #{net_forward.1} parent=11 // pred_fallthru
          _
        // Predicated region
        $region17: #{net_forward.1} parent=11 // pred_check
          %p388 = pneg %p92
        $region18: #{net_forward.1} parent=11 // pred_check_branch
          %390 = sbr.rel (%p388) target = $region20
        $region19: #{net_forward.1} parent=11 // pred_region
          _
        $region20: #{net_forward.1} parent=11 // pred_fallthru
          _
        // Predicated region
        $region21: #{net_forward.1} parent=11 // pred_check
          %p391 = pneg %p113
        $region22: #{net_forward.1} parent=11 // pred_check_branch
          %393 = sbr.rel (%p391) target = $region24
        $region23: #{net_forward.1} parent=11 // pred_region
          _
        $region24: #{net_forward.1} parent=11 // pred_fallthru
          _
        // Predicated region
        $region25: #{net_forward.1} parent=11 // pred_check
          %p394 = pneg %p134
        $region26: #{net_forward.1} parent=11 // pred_check_branch
          %396 = sbr.rel (%p394) target = $region28
        $region27: #{net_forward.1} parent=11 // pred_region
          _
        $region28: #{net_forward.1} parent=11 // pred_fallthru
          _
        // Predicated region
        $region29: #{net_forward.1} parent=11 // pred_check
          %p397 = pneg %p155
        $region30: #{net_forward.1} parent=11 // pred_check_branch
          %399 = sbr.rel (%p397) target = $region32
        $region31: #{net_forward.1} parent=11 // pred_region
          _
        $region32: #{net_forward.1} parent=11 // pred_fallthru
          _
        // Predicated region
        $region33: #{net_forward.1} parent=11 // pred_check
          %p400 = pneg %p176
        $region34: #{net_forward.1} parent=11 // pred_check_branch
          %402 = sbr.rel (%p400) target = $region36
        $region35: #{net_forward.1} parent=11 // pred_region
          _
        $region36: #{net_forward.1} parent=11 // pred_fallthru
          _
        // Predicated region
        $region37: #{net_forward.1} parent=11 // pred_check
          %p403 = pneg %p197
        $region38: #{net_forward.1} parent=11 // pred_check_branch
          %405 = sbr.rel (%p403) target = $region40
        $region39: #{net_forward.1} parent=11 // pred_region
          _
        $region40: #{net_forward.1} parent=11 // pred_fallthru
          _
        // Predicated region
        $region41: #{net_forward.1} parent=11 // pred_check
          %p406 = pneg %p218
        $region42: #{net_forward.1} parent=11 // pred_check_branch
          %408 = sbr.rel (%p406) target = $region44
        $region43: #{net_forward.1} parent=11 // pred_region
          _
        $region44: #{net_forward.1} parent=11 // pred_fallthru
          _
        // Predicated region
        $region45: #{net_forward.1} parent=11 // pred_check
          %p409 = pneg %p239
        $region46: #{net_forward.1} parent=11 // pred_check_branch
          %411 = sbr.rel (%p409) target = $region48
        $region47: #{net_forward.1} parent=11 // pred_region
          _
        $region48: #{net_forward.1} parent=11 // pred_fallthru
          _
        // Predicated region
        $region49: #{net_forward.1} parent=11 // pred_check
          %p412 = pneg %p260
        $region50: #{net_forward.1} parent=11 // pred_check_branch
          %414 = sbr.rel (%p412) target = $region52
        $region51: #{net_forward.1} parent=11 // pred_region
          _
        $region52: #{net_forward.1} parent=11 // pred_fallthru
          _
        // Predicated region
        $region53: #{net_forward.1} parent=11 // pred_check
          %p415 = pneg %p281
        $region54: #{net_forward.1} parent=11 // pred_check_branch
          %417 = sbr.rel (%p415) target = $region56
        $region55: #{net_forward.1} parent=11 // pred_region
          _
        $region56: #{net_forward.1} parent=11 // pred_fallthru
          _
        // Predicated region
        $region57: #{net_forward.1} parent=11 // pred_check
          %p418 = pneg %p302
        $region58: #{net_forward.1} parent=11 // pred_check_branch
          %420 = sbr.rel (%p418) target = $region60
        $region59: #{net_forward.1} parent=11 // pred_region
          _
        $region60: #{net_forward.1} parent=11 // pred_fallthru
          _
        // Predicated region
        $region61: #{net_forward.1} parent=11 // pred_check
          %p421 = pneg %p323
        $region62: #{net_forward.1} parent=11 // pred_check_branch
          %423 = sbr.rel (%p421) target = $region64
        $region63: #{net_forward.1} parent=11 // pred_region
          _
        $region64: #{net_forward.1} parent=11 // pred_fallthru
          _
        // Predicated region
        $region65: #{net_forward.1} parent=11 // pred_check
          %p424 = pneg %p344
        $region66: #{net_forward.1} parent=11 // pred_check_branch
          %426 = sbr.rel (%p424) target = $region68
        $region67: #{net_forward.1} parent=11 // pred_region
          _
        $region68: #{net_forward.1} parent=11 // pred_fallthru
          _
      $region12: #{net_forward.1} parent=5 // pred_fallthru
        _
      %p427 = scmp.lt.s32.totalorder %s24, 2
      // Predicated region
      $region69: #{net_forward.1} parent=5 // pred_check
        %p428 = pneg %p427
      $region70: #{net_forward.1} parent=5 // pred_check_branch
        %430 = sbr.rel (%p428) target = $region72
      $region71: #{net_forward.1} parent=5 // pred_region
        // Predicated region
        $region73: #{net_forward.1} parent=71 // pred_check
          %p431 = pneg %p44
        $region74: #{net_forward.1} parent=71 // pred_check_branch
          %433 = sbr.rel (%p431) target = $region76
        $region75: #{net_forward.1} parent=71 // pred_region
          %p434 = scmp.lt.s32.totalorder %s24, 1
          %s435 = scalar_select %p434, %s24, 1
          %s436 = smul.addr %s435, 4
          %s437 = smul.addr %s436, 8
          %s438 = scalar_lea.vmem %s0, %s437
        $region76: #{net_forward.1} parent=71 // pred_fallthru
          _
      $region72: #{net_forward.1} parent=5 // pred_fallthru
        _
      %p439 = scmp.le.s32.totalorder 1, %s24
      %p440 = scmp.lt.s32.totalorder %s24, 3
      %p441 = pnand %p439, %p440
      %p442 = pneg %p441
      // Predicated region
      $region77: #{net_forward.1} parent=5 // pred_check
        _
      $region78: #{net_forward.1} parent=5 // pred_check_branch
        %444 = sbr.rel (%p441) target = $region80
      $region79: #{net_forward.1} parent=5 // pred_region
        %s445 = ssub.s32 %s24, 1
        %p446 = scmp.lt.s32.totalorder %s29, 1
        %s447 = scalar_select %p446, %s29, 1
        %s448 = smul.addr %s447, 4
        %s449 = smul.addr %s448, 8
        %s450 = scalar_lea.vmem %s0, %s449
        %p451 = pneg %p50
        %p452 = pneg %p47
        %p453 = pneg %p71
        %p454 = pneg %p68
        %p455 = pneg %p92
        %p456 = pneg %p89
        %p457 = pneg %p113
        %p458 = pneg %p110
        %p459 = pneg %p134
        %p460 = pneg %p131
        %p461 = pneg %p155
        %p462 = pneg %p152
        %p463 = pneg %p176
        %p464 = pneg %p173
        %p465 = pneg %p197
        %p466 = pneg %p194
        %p467 = pneg %p218
        %p468 = pneg %p215
        %p469 = pneg %p239
        %p470 = pneg %p236
        %p471 = pneg %p260
        %p472 = pneg %p257
        %p473 = pneg %p281
        %p474 = pneg %p278
        %p475 = pneg %p302
        %p476 = pneg %p299
        %p477 = pneg %p323
        %p478 = pneg %p320
        %p479 = pneg %p344
        %p480 = pneg %p341
        %p481 = pneg %p370
        %p482 = pneg %p367
        %s483 = sand.u32 %s357, 1
        %s484 = scalar_lea.sflag [#allocation3], %s483
        %s485 = sand.u32 %s357, 1
        %s486 = scalar_lea.vmem [#allocation2], %s485
        %p487 = scmp.lt.s32.totalorder %s29, 1
        %s488 = scalar_select %p487, %s29, 1
        %s489 = smul.addr %s488, 4
        %s490 = smul.addr %s489, 8
        %s491 = scalar_lea.vmem %s0, %s490
        %v493 = vld [vmem:[%s491] sm:$0xff]
        %v494 = vld [vmem:[%s491 + $0x8] sm:$0xff]
        %v495 = vld [vmem:[%s491 + $0x10] sm:$0xff]
        %v496 = vld [vmem:[%s491 + $0x18] sm:$0xff]
        %v497 = vpack.c.bf16 %v494, %v493
        %v498 = vpack.c.bf16 %v496, %v495
        %v499 = vld [vmem:[%s1] sm:$0xf]
        %v500 = vld [vmem:[%s1 + $0x4] sm:$0xf]
        %v501 = vld [vmem:[%s1 + $0x8] sm:$0xf]
        %v502 = vld [vmem:[%s1 + $0xc] sm:$0xf]
        %s503 = scalar_lea.vmem %s1, 16
        %v504 = vld [vmem:[%s503] sm:$0xf]
        %v505 = vld [vmem:[%s503 + $0x4] sm:$0xf]
        %v506 = vld [vmem:[%s503 + $0x8] sm:$0xf]
        %v507 = vld [vmem:[%s503 + $0xc] sm:$0xf]
        %vm508 = vsmask.f32 7424
        %v510 = vshrl.u32 %v497, 16
        %v512 = vshll.u32 %v497, 16
        %v514 = vrot.slane %v512, 1
        %v515 = vor.u32 %v510, %v514
        %v517 = vshll.u32 %v498, 16
        %v519 = vrot.slane %v517, 1
        %v520 = vsel %vm508, %v515, %v519
        %v521 = vshrl.u32 %v498, 16
        %v523 = vor.u32 %v521, %v519
        %v528 = vunpack.c.l.b16 %v504
        %v529 = vunpack.c.l.b16 %v505
        %v530 = vunpack.c.l.b16 %v506
        %v531 = vunpack.c.l.b16 %v507
        %v532 = vpack.c.b16 %v529, %v528
        %v533 = vpack.c.b16 %v531, %v530
        %vm536 = vcmask 261120
        %v538 = vsel %vm536, %v520, 0
        %v541 = vsel %vm536, %v523, 0
        %543 = vmatprep.subr.bf16.mxu0 0
        %544 = vmatpush1.bf16.msra.mxu0 0
        %545 = vmatprep.subr.bf16.mxu0 0
        %546 = vmatpush1.bf16.msra.mxu0 0
        %547 = vmatprep.subr.bf16.mxu0 0
        %548 = vmatpush1.bf16.msra.mxu0 0
        %549 = vmatprep.subr.bf16.mxu0 0
        %550 = vmatpush1.bf16.msra.mxu0 0
        %551 = vmatprep.subr.bf16.mxu0 0
        %552 = vmatpush1.bf16.msra.mxu0 0
        %553 = vmatprep.subr.bf16.mxu0 0
        %554 = vmatpush1.bf16.msra.mxu0 0
        %555 = vmatprep.subr.bf16.mxu0 0
        %556 = vmatpush1.bf16.msra.mxu0 %v533
        %557 = vmatprep.subr.bf16.mxu0 0
        %558 = vmatpush1.bf16.msra.mxu0 %v532
        %559 = vmatprep.subr.bf16.mxu0 0
        %560 = vmatpush2.bf16.msra.mxu0 0
        %561 = vmatprep.subr.bf16.mxu0 0
        %562 = vmatpush2.bf16.msra.mxu0 0
        %563 = vmatprep.subr.bf16.mxu0 0
        %564 = vmatpush2.bf16.msra.mxu0 0
        %565 = vmatprep.subr.bf16.mxu0 0
        %566 = vmatpush2.bf16.msra.mxu0 0
        %567 = vmatprep.subr.bf16.mxu0 0
        %568 = vmatpush2.bf16.msra.mxu0 0
        %569 = vmatprep.subr.bf16.mxu0 0
        %570 = vmatpush2.bf16.msra.mxu0 0
        %571 = vmatprep.subr.bf16.mxu0 0
        %572 = vmatpush2.bf16.msra.mxu0 0
        %573 = vmatprep.subr.bf16.mxu0 0
        %574 = vmatpush2.bf16.msra.mxu0 0
        %575 = vmatprep.mubr.bf16.mxu0 0
        %576 = vmatmul.mubr.bf16.gmra.mxu0 %v538
        %v577 = vpop.f32.mrf.mxu0
        %v578 = vadd.f32 0.0, %v577
        %v579 = vpop.f32.mrf.mxu0
        %v580 = vpop.f32.mrf.mxu0
        %v581 = vadd.f32 0.0, %v580
        %v582 = vpop.f32.mrf.mxu0
        %583 = vmatprep.mubr.bf16.mxu0 0
        %584 = vmatmul.mubr.bf16.gmra.mxu0 %v541
        %v585 = vpop.f32.mrf.mxu0
        %v586 = vadd.f32 0.0, %v585
        %v587 = vpop.f32.mrf.mxu0
        %v588 = vpop.f32.mrf.mxu0
        %v589 = vadd.f32 0.0, %v588
        %v590 = vpop.f32.mrf.mxu0
        %591 = vdwg.mxu0
        %v596 = vunpack.c.l.b16 %v499
        %v597 = vunpack.c.l.b16 %v500
        %v598 = vunpack.c.l.b16 %v501
        %v599 = vunpack.c.l.b16 %v502
        %v600 = vpack.c.b16 %v597, %v596
        %v601 = vpack.c.b16 %v599, %v598
        %v604 = vsel %vm536, %v497, 0
        %v606 = vsel %vm536, %v498, 0
        %608 = vmatprep.subr.bf16.mxu0 0
        %609 = vmatpush1.bf16.msra.mxu0 0
        %610 = vmatprep.subr.bf16.mxu0 0
        %611 = vmatpush1.bf16.msra.mxu0 0
        %612 = vmatprep.subr.bf16.mxu0 0
        %613 = vmatpush1.bf16.msra.mxu0 0
        %614 = vmatprep.subr.bf16.mxu0 0
        %615 = vmatpush1.bf16.msra.mxu0 0
        %616 = vmatprep.subr.bf16.mxu0 0
        %617 = vmatpush1.bf16.msra.mxu0 0
        %618 = vmatprep.subr.bf16.mxu0 0
        %619 = vmatpush1.bf16.msra.mxu0 0
        %620 = vmatprep.subr.bf16.mxu0 0
        %621 = vmatpush1.bf16.msra.mxu0 %v601
        %622 = vmatprep.subr.bf16.mxu0 0
        %623 = vmatpush1.bf16.msra.mxu0 %v600
        %624 = vmatprep.subr.bf16.mxu0 0
        %625 = vmatpush2.bf16.msra.mxu0 0
        %626 = vmatprep.subr.bf16.mxu0 0
        %627 = vmatpush2.bf16.msra.mxu0 0
        %628 = vmatprep.subr.bf16.mxu0 0
        %629 = vmatpush2.bf16.msra.mxu0 0
        %630 = vmatprep.subr.bf16.mxu0 0
        %631 = vmatpush2.bf16.msra.mxu0 0
        %632 = vmatprep.subr.bf16.mxu0 0
        %633 = vmatpush2.bf16.msra.mxu0 0
        %634 = vmatprep.subr.bf16.mxu0 0
        %635 = vmatpush2.bf16.msra.mxu0 0
        %636 = vmatprep.subr.bf16.mxu0 0
        %637 = vmatpush2.bf16.msra.mxu0 0
        %638 = vmatprep.subr.bf16.mxu0 0
        %639 = vmatpush2.bf16.msra.mxu0 0
        %640 = vmatprep.mubr.bf16.mxu0 0
        %641 = vmatmul.mubr.bf16.gmra.mxu0 %v604
        %v642 = vpop.f32.mrf.mxu0
        %v643 = vadd.f32 %v578, %v642
        %v644 = vpop.f32.mrf.mxu0
        %v645 = vpop.f32.mrf.mxu0
        %v646 = vadd.f32 %v581, %v645
        %v647 = vpop.f32.mrf.mxu0
        %648 = vmatprep.mubr.bf16.mxu0 0
        %649 = vmatmul.mubr.bf16.gmra.mxu0 %v606
        %v650 = vpop.f32.mrf.mxu0
        %v651 = vadd.f32 %v586, %v650
        %v652 = vpop.f32.mrf.mxu0
        %v653 = vpop.f32.mrf.mxu0
        %v654 = vadd.f32 %v589, %v653
        %v655 = vpop.f32.mrf.mxu0
        %656 = vdwg.mxu0
        %s657 = scalar_lea.vmem %s1, 32
        %v658 = vld [vmem:[%s657] sm:$0xf]
        %v659 = vld [vmem:[%s657 + $0x4] sm:$0xf]
        %v660 = vld [vmem:[%s657 + $0x8] sm:$0xf]
        %v661 = vld [vmem:[%s657 + $0xc] sm:$0xf]
        %vm664 = vcmask 1046528
        %v665 = vrot.slane %v497, 1
        %v666 = vrot.slane %v498, 1
        %v667 = vsel %vm664, %v665, %v666
        %v672 = vunpack.c.l.b16 %v658
        %v673 = vunpack.c.l.b16 %v659
        %v674 = vunpack.c.l.b16 %v660
        %v675 = vunpack.c.l.b16 %v661
        %v676 = vpack.c.b16 %v673, %v672
        %v677 = vpack.c.b16 %v675, %v674
        %v681 = vsel %vm536, %v667, 0
        %v684 = vsel %vm536, %v666, 0
        %686 = vmatprep.subr.bf16.mxu0 0
        %687 = vmatpush1.bf16.msra.mxu0 0
        %688 = vmatprep.subr.bf16.mxu0 0
        %689 = vmatpush1.bf16.msra.mxu0 0
        %690 = vmatprep.subr.bf16.mxu0 0
        %691 = vmatpush1.bf16.msra.mxu0 0
        %692 = vmatprep.subr.bf16.mxu0 0
        %693 = vmatpush1.bf16.msra.mxu0 0
        %694 = vmatprep.subr.bf16.mxu0 0
        %695 = vmatpush1.bf16.msra.mxu0 0
        %696 = vmatprep.subr.bf16.mxu0 0
        %697 = vmatpush1.bf16.msra.mxu0 0
        %698 = vmatprep.subr.bf16.mxu0 0
        %699 = vmatpush1.bf16.msra.mxu0 %v677
        %700 = vmatprep.subr.bf16.mxu0 0
        %701 = vmatpush1.bf16.msra.mxu0 %v676
        %702 = vmatprep.subr.bf16.mxu0 0
        %703 = vmatpush2.bf16.msra.mxu0 0
        %704 = vmatprep.subr.bf16.mxu0 0
        %705 = vmatpush2.bf16.msra.mxu0 0
        %706 = vmatprep.subr.bf16.mxu0 0
        %707 = vmatpush2.bf16.msra.mxu0 0
        %708 = vmatprep.subr.bf16.mxu0 0
        %709 = vmatpush2.bf16.msra.mxu0 0
        %710 = vmatprep.subr.bf16.mxu0 0
        %711 = vmatpush2.bf16.msra.mxu0 0
        %712 = vmatprep.subr.bf16.mxu0 0
        %713 = vmatpush2.bf16.msra.mxu0 0
        %714 = vmatprep.subr.bf16.mxu0 0
        %715 = vmatpush2.bf16.msra.mxu0 0
        %716 = vmatprep.subr.bf16.mxu0 0
        %717 = vmatpush2.bf16.msra.mxu0 0
        %718 = vmatprep.mubr.bf16.mxu0 0
        %719 = vmatmul.mubr.bf16.gmra.mxu0 %v681
        %v720 = vpop.f32.mrf.mxu0
        %v721 = vadd.f32 0.0, %v720
        %v722 = vpop.f32.mrf.mxu0
        %v723 = vpop.f32.mrf.mxu0
        %v724 = vadd.f32 0.0, %v723
        %v725 = vpop.f32.mrf.mxu0
        %726 = vmatprep.mubr.bf16.mxu0 0
        %727 = vmatmul.mubr.bf16.gmra.mxu0 %v684
        %v728 = vpop.f32.mrf.mxu0
        %v729 = vadd.f32 0.0, %v728
        %v730 = vpop.f32.mrf.mxu0
        %v731 = vpop.f32.mrf.mxu0
        %v732 = vadd.f32 0.0, %v731
        %v733 = vpop.f32.mrf.mxu0
        %734 = vdwg.mxu0
        %v735 = vadd.f32 %v643, %v721
        %v736 = vadd.f32 %v646, %v724
        %v737 = vadd.f32 %v651, %v729
        %v738 = vadd.f32 %v654, %v732
        %s739 = scalar_lea.vmem %s1, 48
        %v740 = vld [vmem:[%s739] sm:$0xf]
        %v741 = vld [vmem:[%s739 + $0x4] sm:$0xf]
        %v742 = vld [vmem:[%s739 + $0x8] sm:$0xf]
        %v743 = vld [vmem:[%s739 + $0xc] sm:$0xf]
        %vm744 = vsmask.f32 6400
        %v745 = vrot.slane %v510, 1
        %v746 = vrot.slane %v512, 2
        %v747 = vor.u32 %v745, %v746
        %v748 = vrot.slane %v521, 1
        %v749 = vrot.slane %v517, 2
        %v750 = vor.u32 %v748, %v749
        %v751 = vsel %vm744, %v747, %v750
        %v756 = vunpack.c.l.b16 %v740
        %v757 = vunpack.c.l.b16 %v741
        %v758 = vunpack.c.l.b16 %v742
        %v759 = vunpack.c.l.b16 %v743
        %v760 = vpack.c.b16 %v757, %v756
        %v761 = vpack.c.b16 %v759, %v758
        %v765 = vsel %vm536, %v751, 0
        %v768 = vsel %vm536, %v750, 0
        %770 = vmatprep.subr.bf16.mxu0 0
        %771 = vmatpush1.bf16.msra.mxu0 0
        %772 = vmatprep.subr.bf16.mxu0 0
        %773 = vmatpush1.bf16.msra.mxu0 0
        %774 = vmatprep.subr.bf16.mxu0 0
        %775 = vmatpush1.bf16.msra.mxu0 0
        %776 = vmatprep.subr.bf16.mxu0 0
        %777 = vmatpush1.bf16.msra.mxu0 0
        %778 = vmatprep.subr.bf16.mxu0 0
        %779 = vmatpush1.bf16.msra.mxu0 0
        %780 = vmatprep.subr.bf16.mxu0 0
        %781 = vmatpush1.bf16.msra.mxu0 0
        %782 = vmatprep.subr.bf16.mxu0 0
        %783 = vmatpush1.bf16.msra.mxu0 %v761
        %784 = vmatprep.subr.bf16.mxu0 0
        %785 = vmatpush1.bf16.msra.mxu0 %v760
        %786 = vmatprep.subr.bf16.mxu0 0
        %787 = vmatpush2.bf16.msra.mxu0 0
        %788 = vmatprep.subr.bf16.mxu0 0
        %789 = vmatpush2.bf16.msra.mxu0 0
        %790 = vmatprep.subr.bf16.mxu0 0
        %791 = vmatpush2.bf16.msra.mxu0 0
        %792 = vmatprep.subr.bf16.mxu0 0
        %793 = vmatpush2.bf16.msra.mxu0 0
        %794 = vmatprep.subr.bf16.mxu0 0
        %795 = vmatpush2.bf16.msra.mxu0 0
        %796 = vmatprep.subr.bf16.mxu0 0
        %797 = vmatpush2.bf16.msra.mxu0 0
        %798 = vmatprep.subr.bf16.mxu0 0
        %799 = vmatpush2.bf16.msra.mxu0 0
        %800 = vmatprep.subr.bf16.mxu0 0
        %801 = vmatpush2.bf16.msra.mxu0 0
        %802 = vmatprep.mubr.bf16.mxu0 0
        %803 = vmatmul.mubr.bf16.gmra.mxu0 %v765
        %v804 = vpop.f32.mrf.mxu0
        %v805 = vadd.f32 0.0, %v804
        %v806 = vpop.f32.mrf.mxu0
        %v807 = vpop.f32.mrf.mxu0
        %v808 = vadd.f32 0.0, %v807
        %v809 = vpop.f32.mrf.mxu0
        %810 = vmatprep.mubr.bf16.mxu0 0
        %811 = vmatmul.mubr.bf16.gmra.mxu0 %v768
        %v812 = vpop.f32.mrf.mxu0
        %v813 = vadd.f32 0.0, %v812
        %v814 = vpop.f32.mrf.mxu0
        %v815 = vpop.f32.mrf.mxu0
        %v816 = vadd.f32 0.0, %v815
        %v817 = vpop.f32.mrf.mxu0
        %818 = vdwg.mxu0
        %v819 = vadd.f32 %v735, %v805
        %v820 = vadd.f32 %v736, %v808
        %v821 = vadd.f32 %v737, %v813
        %v822 = vadd.f32 %v738, %v816
        %s823 = scalar_lea.vmem %s1, 64
        %v824 = vld [vmem:[%s823] sm:$0xf]
        %v825 = vld [vmem:[%s823 + $0x4] sm:$0xf]
        %v826 = vld [vmem:[%s823 + $0x8] sm:$0xf]
        %v827 = vld [vmem:[%s823 + $0xc] sm:$0xf]
        %vm828 = vcmask 1045504
        %v829 = vrot.slane %v497, 2
        %v830 = vrot.slane %v498, 2
        %v831 = vsel %vm828, %v829, %v830
        %v836 = vunpack.c.l.b16 %v824
        %v837 = vunpack.c.l.b16 %v825
        %v838 = vunpack.c.l.b16 %v826
        %v839 = vunpack.c.l.b16 %v827
        %v840 = vpack.c.b16 %v837, %v836
        %v841 = vpack.c.b16 %v839, %v838
        %v845 = vsel %vm536, %v831, 0
        %v848 = vsel %vm536, %v830, 0
        %850 = vmatprep.subr.bf16.mxu0 0
        %851 = vmatpush1.bf16.msra.mxu0 0
        %852 = vmatprep.subr.bf16.mxu0 0
        %853 = vmatpush1.bf16.msra.mxu0 0
        %854 = vmatprep.subr.bf16.mxu0 0
        %855 = vmatpush1.bf16.msra.mxu0 0
        %856 = vmatprep.subr.bf16.mxu0 0
        %857 = vmatpush1.bf16.msra.mxu0 0
        %858 = vmatprep.subr.bf16.mxu0 0
        %859 = vmatpush1.bf16.msra.mxu0 0
        %860 = vmatprep.subr.bf16.mxu0 0
        %861 = vmatpush1.bf16.msra.mxu0 0
        %862 = vmatprep.subr.bf16.mxu0 0
        %863 = vmatpush1.bf16.msra.mxu0 %v841
        %864 = vmatprep.subr.bf16.mxu0 0
        %865 = vmatpush1.bf16.msra.mxu0 %v840
        %866 = vmatprep.subr.bf16.mxu0 0
        %867 = vmatpush2.bf16.msra.mxu0 0
        %868 = vmatprep.subr.bf16.mxu0 0
        %869 = vmatpush2.bf16.msra.mxu0 0
        %870 = vmatprep.subr.bf16.mxu0 0
        %871 = vmatpush2.bf16.msra.mxu0 0
        %872 = vmatprep.subr.bf16.mxu0 0
        %873 = vmatpush2.bf16.msra.mxu0 0
        %874 = vmatprep.subr.bf16.mxu0 0
        %875 = vmatpush2.bf16.msra.mxu0 0
        %876 = vmatprep.subr.bf16.mxu0 0
        %877 = vmatpush2.bf16.msra.mxu0 0
        %878 = vmatprep.subr.bf16.mxu0 0
        %879 = vmatpush2.bf16.msra.mxu0 0
        %880 = vmatprep.subr.bf16.mxu0 0
        %881 = vmatpush2.bf16.msra.mxu0 0
        %882 = vmatprep.mubr.bf16.mxu0 0
        %883 = vmatmul.mubr.bf16.gmra.mxu0 %v845
        %v884 = vpop.f32.mrf.mxu0
        %v885 = vadd.f32 0.0, %v884
        %v886 = vpop.f32.mrf.mxu0
        %v887 = vpop.f32.mrf.mxu0
        %v888 = vadd.f32 0.0, %v887
        %v889 = vpop.f32.mrf.mxu0
        %890 = vmatprep.mubr.bf16.mxu0 0
        %891 = vmatmul.mubr.bf16.gmra.mxu0 %v848
        %v892 = vpop.f32.mrf.mxu0
        %v893 = vadd.f32 0.0, %v892
        %v894 = vpop.f32.mrf.mxu0
        %v895 = vpop.f32.mrf.mxu0
        %v896 = vadd.f32 0.0, %v895
        %v897 = vpop.f32.mrf.mxu0
        %898 = vdwg.mxu0
        %v899 = vadd.f32 %v819, %v885
        %v900 = vadd.f32 %v820, %v888
        %v901 = vadd.f32 %v821, %v893
        %v902 = vadd.f32 %v822, %v896
        %v903 = vld [vmem:[%s2] sm:$0x1]
        %v905 = vlaneseq
        %v906 = vshrl.u32 %v905, 7
        %v907 = vsub.s32 0, %v906
        %v908 = vrot.slane %v903, %v907
        %v910 = vadd.f32 %v899, %v908
        %v911 = vadd.f32 %v900, %v908
        %v912 = vadd.f32 %v901, %v908
        %v913 = vadd.f32 %v902, %v908
        %v914 = vmax.f32 %v910, 0.0
        %v915 = vmax.f32 %v911, 0.0
        %v916 = vmax.f32 %v912, 0.0
        %v917 = vmax.f32 %v913, 0.0
        %922 = vrot.lane.b32.xlu0 %v914, 127
        %v923 = vpop.permute.xlu0 %922
        %924 = vrot.lane.b32.xlu0 %v915, 127
        %v925 = vpop.permute.xlu0 %924
        %926 = vrot.lane.b32.xlu0 %v916, 127
        %v927 = vpop.permute.xlu0 %926
        %928 = vrot.lane.b32.xlu0 %v917, 127
        %v929 = vpop.permute.xlu0 %928
        %v934 = vmax.f32 %v914, %v923
        %v935 = vmax.f32 %v915, %v925
        %v936 = vmax.f32 %v916, %v927
        %v937 = vmax.f32 %v917, %v929
        %vm942 = vcmask 1046528
        %v943 = vrot.slane %v934, 1
        %v944 = vrot.slane %v935, 1
        %v945 = vsel %vm942, %v943, %v944
        %v946 = vrot.slane %v936, 1
        %v947 = vsel %vm942, %v944, %v946
        %v948 = vrot.slane %v937, 1
        %v949 = vsel %vm942, %v946, %v948
        %v954 = vmax.f32 %v934, %v945
        %v955 = vmax.f32 %v935, %v947
        %v956 = vmax.f32 %v936, %v949
        %v957 = vmax.f32 %v937, %v948
        %v958 = vld [vmem:[%s5] sm:$0xff]
        %v959 = vld [vmem:[%s5 + $0x8] sm:$0x3f]
        %vm960 = vcmask 220160
        %v962 = vsel %vm960, %v958, 0
        %v965 = vsel %vm960, %v959, 0
        %vm967 = vcmask 1042432
        %v969 = vsel %vm967, %v957, 0
        %971 = vmatprep.subr.mxu0 0.0
        %972 = vmatpush1.msra.mxu0 0.0
        %973 = vmatprep.subr.mxu0 0.0
        %974 = vmatpush1.msra.mxu0 0.0
        %975 = vmatprep.subr.mxu0 0.0
        %976 = vmatpush1.msra.mxu0 0.0
        %977 = vmatprep.subr.mxu0 0.0
        %978 = vmatpush1.msra.mxu0 0.0
        %979 = vmatprep.subr.mxu0 0.0
        %980 = vmatpush1.msra.mxu0 0.0
        %981 = vmatprep.subr.mxu0 0.0
        %982 = vmatpush1.msra.mxu0 0.0
        %983 = vmatprep.subr.mxu0 0.0
        %984 = vmatpush1.msra.mxu0 0.0
        %985 = vmatprep.subr.mxu0 0.0
        %986 = vmatpush1.msra.mxu0 0.0
        %987 = vmatprep.subr.mxu0 0.0
        %988 = vmatpush1.msra.mxu0 0.0
        %989 = vmatprep.subr.mxu0 0.0
        %990 = vmatpush1.msra.mxu0 0.0
        %991 = vmatprep.subr.mxu0 0.0
        %992 = vmatpush1.msra.mxu0 0.0
        %993 = vmatprep.subr.mxu0 0.0
        %994 = vmatpush1.msra.mxu0 0.0
        %995 = vmatprep.subr.mxu0 0.0
        %996 = vmatpush1.msra.mxu0 %v969
        %997 = vmatprep.subr.mxu0 0.0
        %998 = vmatpush1.msra.mxu0 %v956
        %999 = vmatprep.subr.mxu0 0.0
        %1000 = vmatpush1.msra.mxu0 %v955
        %1001 = vmatprep.subr.mxu0 0.0
        %1002 = vmatpush1.msra.mxu0 %v954
        %1003 = vmatprep.subr.mxu0 0.0
        %1004 = vmatpush2.msra.mxu0 0.0
        %1005 = vmatprep.subr.mxu0 0.0
        %1006 = vmatpush2.msra.mxu0 0.0
        %1007 = vmatprep.subr.mxu0 0.0
        %1008 = vmatpush2.msra.mxu0 0.0
        %1009 = vmatprep.subr.mxu0 0.0
        %1010 = vmatpush2.msra.mxu0 0.0
        %1011 = vmatprep.subr.mxu0 0.0
        %1012 = vmatpush2.msra.mxu0 0.0
        %1013 = vmatprep.subr.mxu0 0.0
        %1014 = vmatpush2.msra.mxu0 0.0
        %1015 = vmatprep.subr.mxu0 0.0
        %1016 = vmatpush2.msra.mxu0 0.0
        %1017 = vmatprep.subr.mxu0 0.0
        %1018 = vmatpush2.msra.mxu0 0.0
        %1019 = vmatprep.subr.mxu0 0.0
        %1020 = vmatpush2.msra.mxu0 0.0
        %1021 = vmatprep.subr.mxu0 0.0
        %1022 = vmatpush2.msra.mxu0 0.0
        %1023 = vmatprep.subr.mxu0 0.0
        %1024 = vmatpush2.msra.mxu0 0.0
        %1025 = vmatprep.subr.mxu0 0.0
        %1026 = vmatpush2.msra.mxu0 0.0
        %1027 = vmatprep.subr.mxu0 0.0
        %1028 = vmatpush2.msra.mxu0 0.0
        %1029 = vmatprep.subr.mxu0 0.0
        %1030 = vmatpush2.msra.mxu0 0.0
        %1031 = vmatprep.subr.mxu0 0.0
        %1032 = vmatpush2.msra.mxu0 0.0
        %1033 = vmatprep.subr.mxu0 0.0
        %1034 = vmatpush2.msra.mxu0 0.0
        %1035 = vmatprep.mubr.f32.mxu0 0.0
        %1036 = vmatmul.mubr.f32.gmra.mxu0 %v962
        %v1037 = vpop.f32.mrf.mxu0
        %v1038 = vadd.f32 0.0, %v1037
        %v1039 = vpop.f32.mrf.mxu0
        %1040 = vmatprep.mubr.f32.mxu0 0.0
        %1041 = vmatmul.mubr.f32.gmra.mxu0 %v965
        %v1042 = vpop.f32.mrf.mxu0
        %v1043 = vadd.f32 0.0, %v1042
        %v1044 = vpop.f32.mrf.mxu0
        %1045 = vdwg.mxu0
        %v1046 = vld [vmem:[%s6] sm:$0xff]
        %v1047 = vld [vmem:[%s6 + $0x8] sm:$0xff]
        %v1048 = vld [vmem:[%s6 + $0x10] sm:$0xff]
        %v1049 = vld [vmem:[%s6 + $0x18] sm:$0xff]
        %v1050 = vld [vmem:[%s6 + $0x20] sm:$0xff]
        %v1051 = vld [vmem:[%s6 + $0x28] sm:$0xff]
        %v1052 = vld [vmem:[%s6 + $0x30] sm:$0x7f]
        %vm1053 = vcmask 449536
        %v1055 = vsel %vm1053, %v1038, 0
        %v1058 = vsel %vm1053, %v1043, 0
        %v1061 = vsel %vm942, %v1052, 0
        %1063 = vmatprep.subr.mxu0 0.0
        %1064 = vmatpush1.msra.mxu0 0.0
        %1065 = vmatprep.subr.mxu0 0.0
        %1066 = vmatpush1.msra.mxu0 0.0
        %1067 = vmatprep.subr.mxu0 0.0
        %1068 = vmatpush1.msra.mxu0 0.0
        %1069 = vmatprep.subr.mxu0 0.0
        %1070 = vmatpush1.msra.mxu0 0.0
        %1071 = vmatprep.subr.mxu0 0.0
        %1072 = vmatpush1.msra.mxu0 0.0
        %1073 = vmatprep.subr.mxu0 0.0
        %1074 = vmatpush1.msra.mxu0 0.0
        %1075 = vmatprep.subr.mxu0 0.0
        %1076 = vmatpush1.msra.mxu0 0.0
        %1077 = vmatprep.subr.mxu0 0.0
        %1078 = vmatpush1.msra.mxu0 0.0
        %1079 = vmatprep.subr.mxu0 0.0
        %1080 = vmatpush1.msra.mxu0 0.0
        %1081 = vmatprep.subr.mxu0 0.0
        %1082 = vmatpush1.msra.mxu0 %v1061
        %1083 = vmatprep.subr.mxu0 0.0
        %1084 = vmatpush1.msra.mxu0 %v1051
        %1085 = vmatprep.subr.mxu0 0.0
        %1086 = vmatpush1.msra.mxu0 %v1050
        %1087 = vmatprep.subr.mxu0 0.0
        %1088 = vmatpush1.msra.mxu0 %v1049
        %1089 = vmatprep.subr.mxu0 0.0
        %1090 = vmatpush1.msra.mxu0 %v1048
        %1091 = vmatprep.subr.mxu0 0.0
        %1092 = vmatpush1.msra.mxu0 %v1047
        %1093 = vmatprep.subr.mxu0 0.0
        %1094 = vmatpush1.msra.mxu0 %v1046
        %1095 = vmatprep.subr.mxu0 0.0
        %1096 = vmatpush2.msra.mxu0 0.0
        %1097 = vmatprep.subr.mxu0 0.0
        %1098 = vmatpush2.msra.mxu0 0.0
        %1099 = vmatprep.subr.mxu0 0.0
        %1100 = vmatpush2.msra.mxu0 0.0
        %1101 = vmatprep.subr.mxu0 0.0
        %1102 = vmatpush2.msra.mxu0 0.0
        %1103 = vmatprep.subr.mxu0 0.0
        %1104 = vmatpush2.msra.mxu0 0.0
        %1105 = vmatprep.subr.mxu0 0.0
        %1106 = vmatpush2.msra.mxu0 0.0
        %1107 = vmatprep.subr.mxu0 0.0
        %1108 = vmatpush2.msra.mxu0 0.0
        %1109 = vmatprep.subr.mxu0 0.0
        %1110 = vmatpush2.msra.mxu0 0.0
        %1111 = vmatprep.subr.mxu0 0.0
        %1112 = vmatpush2.msra.mxu0 0.0
        %1113 = vmatprep.subr.mxu0 0.0
        %1114 = vmatpush2.msra.mxu0 0.0
        %1115 = vmatprep.subr.mxu0 0.0
        %1116 = vmatpush2.msra.mxu0 0.0
        %1117 = vmatprep.subr.mxu0 0.0
        %1118 = vmatpush2.msra.mxu0 0.0
        %1119 = vmatprep.subr.mxu0 0.0
        %1120 = vmatpush2.msra.mxu0 0.0
        %1121 = vmatprep.subr.mxu0 0.0
        %1122 = vmatpush2.msra.mxu0 0.0
        %1123 = vmatprep.subr.mxu0 0.0
        %1124 = vmatpush2.msra.mxu0 0.0
        %1125 = vmatprep.subr.mxu0 0.0
        %1126 = vmatpush2.msra.mxu0 0.0
        %1127 = vmatprep.mubr.f32.mxu0 0.0
        %1128 = vmatmul.mubr.f32.gmra.mxu0 %v1055
        %v1129 = vpop.f32.mrf.mxu0
        %v1130 = vadd.f32 0.0, %v1129
        %v1131 = vpop.f32.mrf.mxu0
        %1132 = vmatprep.mubr.f32.mxu0 0.0
        %1133 = vmatmul.mubr.f32.gmra.mxu0 %v1058
        %v1134 = vpop.f32.mrf.mxu0
        %v1135 = vadd.f32 0.0, %v1134
        %v1136 = vpop.f32.mrf.mxu0
        %1137 = vdwg.mxu0
        %v1138 = vpack.c.bf16 %v1135, %v1130
        %v1139 = vld [vmem:[%s3] sm:$0xff]
        %v1140 = vld [vmem:[%s3 + $0x8] sm:$0x77]
        %s1141 = scalar_lea.vmem %s3, 16
        %v1142 = vld [vmem:[%s1141] sm:$0xff]
        %v1143 = vld [vmem:[%s1141 + $0x8] sm:$0x77]
        %v1145 = vshrl.u32 %v1138, 16
        %v1147 = vshll.u32 %v1138, 16
        %v1149 = vrot.slane %v1147, 1
        %v1150 = vor.u32 %v1145, %v1149
        %v1153 = vunpack.c.l.b16 %v1142
        %v1154 = vunpack.c.h.b16 %v1142
        %v1155 = vunpack.c.l.b16 %v1143
        %v1156 = vunpack.c.h.b16 %v1143
        %v1157 = vpack.c.b16 %v1155, %v1153
        %v1158 = vpack.c.b16 %v1156, %v1154
        %vm1159 = vcmask 113664
        %v1161 = vsel %vm1159, %v1150, 0
        %v1164 = vsel %vm942, %v1157, 0
        %v1167 = vsel %vm942, %v1158, 0
        %1169 = vmatprep.subr.bf16.mxu0 0
        %1170 = vmatpush1.bf16.msra.mxu0 0
        %1171 = vmatprep.subr.bf16.mxu0 0
        %1172 = vmatpush1.bf16.msra.mxu0 0
        %1173 = vmatprep.subr.bf16.mxu0 0
        %1174 = vmatpush1.bf16.msra.mxu0 0
        %1175 = vmatprep.subr.bf16.mxu0 0
        %1176 = vmatpush1.bf16.msra.mxu0 0
        %1177 = vmatprep.subr.bf16.mxu0 0
        %1178 = vmatpush1.bf16.msra.mxu0 0
        %1179 = vmatprep.subr.bf16.mxu0 0
        %1180 = vmatpush1.bf16.msra.mxu0 0
        %1181 = vmatprep.subr.bf16.mxu0 0
        %1182 = vmatpush1.bf16.msra.mxu0 0
        %1183 = vmatprep.subr.bf16.mxu0 %v1167
        %1184 = vmatpush1.bf16.msra.mxu0 %v1164
        %1185 = vmatprep.subr.bf16.mxu0 0
        %1186 = vmatpush2.bf16.msra.mxu0 0
        %1187 = vmatprep.subr.bf16.mxu0 0
        %1188 = vmatpush2.bf16.msra.mxu0 0
        %1189 = vmatprep.subr.bf16.mxu0 0
        %1190 = vmatpush2.bf16.msra.mxu0 0
        %1191 = vmatprep.subr.bf16.mxu0 0
        %1192 = vmatpush2.bf16.msra.mxu0 0
        %1193 = vmatprep.subr.bf16.mxu0 0
        %1194 = vmatpush2.bf16.msra.mxu0 0
        %1195 = vmatprep.subr.bf16.mxu0 0
        %1196 = vmatpush2.bf16.msra.mxu0 0
        %1197 = vmatprep.subr.bf16.mxu0 0
        %1198 = vmatpush2.bf16.msra.mxu0 0
        %1199 = vmatprep.subr.bf16.mxu0 0
        %1200 = vmatpush2.bf16.msra.mxu0 0
        %1201 = vmatprep.mubr.bf16.mxu0 0
        %1202 = vmatmul.mubr.bf16.gmra.mxu0 %v1161
        %v1203 = vpop.f32.mrf.mxu0
        %v1204 = vadd.f32 0.0, %v1203
        %v1205 = vpop.f32.mrf.mxu0
        %v1206 = vadd.f32 0.0, %v1205
        %v1207 = vpop.f32.mrf.mxu0
        %v1208 = vadd.f32 0.0, %v1207
        %v1209 = vpop.f32.mrf.mxu0
        %v1210 = vadd.f32 0.0, %v1209
        %1211 = vdwg.mxu0
        %v1214 = vunpack.c.l.b16 %v1139
        %v1215 = vunpack.c.h.b16 %v1139
        %v1216 = vunpack.c.l.b16 %v1140
        %v1217 = vunpack.c.h.b16 %v1140
        %v1218 = vpack.c.b16 %v1216, %v1214
        %v1219 = vpack.c.b16 %v1217, %v1215
        %v1220 = vsel %vm1159, %v1138, 0
        %v1223 = vsel %vm942, %v1218, 0
        %v1226 = vsel %vm942, %v1219, 0
        %1228 = vmatprep.subr.bf16.mxu0 0
        %1229 = vmatpush1.bf16.msra.mxu0 0
        %1230 = vmatprep.subr.bf16.mxu0 0
        %1231 = vmatpush1.bf16.msra.mxu0 0
        %1232 = vmatprep.subr.bf16.mxu0 0
        %1233 = vmatpush1.bf16.msra.mxu0 0
        %1234 = vmatprep.subr.bf16.mxu0 0
        %1235 = vmatpush1.bf16.msra.mxu0 0
        %1236 = vmatprep.subr.bf16.mxu0 0
        %1237 = vmatpush1.bf16.msra.mxu0 0
        %1238 = vmatprep.subr.bf16.mxu0 0
        %1239 = vmatpush1.bf16.msra.mxu0 0
        %1240 = vmatprep.subr.bf16.mxu0 0
        %1241 = vmatpush1.bf16.msra.mxu0 0
        %1242 = vmatprep.subr.bf16.mxu0 %v1226
        %1243 = vmatpush1.bf16.msra.mxu0 %v1223
        %1244 = vmatprep.subr.bf16.mxu0 0
        %1245 = vmatpush2.bf16.msra.mxu0 0
        %1246 = vmatprep.subr.bf16.mxu0 0
        %1247 = vmatpush2.bf16.msra.mxu0 0
        %1248 = vmatprep.subr.bf16.mxu0 0
        %1249 = vmatpush2.bf16.msra.mxu0 0
        %1250 = vmatprep.subr.bf16.mxu0 0
        %1251 = vmatpush2.bf16.msra.mxu0 0
        %1252 = vmatprep.subr.bf16.mxu0 0
        %1253 = vmatpush2.bf16.msra.mxu0 0
        %1254 = vmatprep.subr.bf16.mxu0 0
        %1255 = vmatpush2.bf16.msra.mxu0 0
        %1256 = vmatprep.subr.bf16.mxu0 0
        %1257 = vmatpush2.bf16.msra.mxu0 0
        %1258 = vmatprep.subr.bf16.mxu0 0
        %1259 = vmatpush2.bf16.msra.mxu0 0
        %1260 = vmatprep.mubr.bf16.mxu0 0
        %1261 = vmatmul.mubr.bf16.gmra.mxu0 %v1220
        %v1262 = vpop.f32.mrf.mxu0
        %v1263 = vadd.f32 %v1204, %v1262
        %v1264 = vpop.f32.mrf.mxu0
        %v1265 = vadd.f32 %v1206, %v1264
        %v1266 = vpop.f32.mrf.mxu0
        %v1267 = vadd.f32 %v1208, %v1266
        %v1268 = vpop.f32.mrf.mxu0
        %v1269 = vadd.f32 %v1210, %v1268
        %1270 = vdwg.mxu0
        %s1271 = scalar_lea.vmem %s3, 32
        %v1272 = vld [vmem:[%s1271] sm:$0xff]
        %v1273 = vld [vmem:[%s1271 + $0x8] sm:$0x77]
        %v1275 = vrot.slane %v1138, 1
        %v1278 = vunpack.c.l.b16 %v1272
        %v1279 = vunpack.c.h.b16 %v1272
        %v1280 = vunpack.c.l.b16 %v1273
        %v1281 = vunpack.c.h.b16 %v1273
        %v1282 = vpack.c.b16 %v1280, %v1278
        %v1283 = vpack.c.b16 %v1281, %v1279
        %v1285 = vsel %vm1159, %v1275, 0
        %v1288 = vsel %vm942, %v1282, 0
        %v1291 = vsel %vm942, %v1283, 0
        %1293 = vmatprep.subr.bf16.mxu0 0
        %1294 = vmatpush1.bf16.msra.mxu0 0
        %1295 = vmatprep.subr.bf16.mxu0 0
        %1296 = vmatpush1.bf16.msra.mxu0 0
        %1297 = vmatprep.subr.bf16.mxu0 0
        %1298 = vmatpush1.bf16.msra.mxu0 0
        %1299 = vmatprep.subr.bf16.mxu0 0
        %1300 = vmatpush1.bf16.msra.mxu0 0
        %1301 = vmatprep.subr.bf16.mxu0 0
        %1302 = vmatpush1.bf16.msra.mxu0 0
        %1303 = vmatprep.subr.bf16.mxu0 0
        %1304 = vmatpush1.bf16.msra.mxu0 0
        %1305 = vmatprep.subr.bf16.mxu0 0
        %1306 = vmatpush1.bf16.msra.mxu0 0
        %1307 = vmatprep.subr.bf16.mxu0 %v1291
        %1308 = vmatpush1.bf16.msra.mxu0 %v1288
        %1309 = vmatprep.subr.bf16.mxu0 0
        %1310 = vmatpush2.bf16.msra.mxu0 0
        %1311 = vmatprep.subr.bf16.mxu0 0
        %1312 = vmatpush2.bf16.msra.mxu0 0
        %1313 = vmatprep.subr.bf16.mxu0 0
        %1314 = vmatpush2.bf16.msra.mxu0 0
        %1315 = vmatprep.subr.bf16.mxu0 0
        %1316 = vmatpush2.bf16.msra.mxu0 0
        %1317 = vmatprep.subr.bf16.mxu0 0
        %1318 = vmatpush2.bf16.msra.mxu0 0
        %1319 = vmatprep.subr.bf16.mxu0 0
        %1320 = vmatpush2.bf16.msra.mxu0 0
        %1321 = vmatprep.subr.bf16.mxu0 0
        %1322 = vmatpush2.bf16.msra.mxu0 0
        %1323 = vmatprep.subr.bf16.mxu0 0
        %1324 = vmatpush2.bf16.msra.mxu0 0
        %1325 = vmatprep.mubr.bf16.mxu0 0
        %1326 = vmatmul.mubr.bf16.gmra.mxu0 %v1285
        %v1327 = vpop.f32.mrf.mxu0
        %v1328 = vadd.f32 0.0, %v1327
        %v1329 = vpop.f32.mrf.mxu0
        %v1330 = vadd.f32 0.0, %v1329
        %v1331 = vpop.f32.mrf.mxu0
        %v1332 = vadd.f32 0.0, %v1331
        %v1333 = vpop.f32.mrf.mxu0
        %v1334 = vadd.f32 0.0, %v1333
        %1335 = vdwg.mxu0
        %v1336 = vadd.f32 %v1263, %v1328
        %v1337 = vadd.f32 %v1265, %v1330
        %v1338 = vadd.f32 %v1267, %v1332
        %v1339 = vadd.f32 %v1269, %v1334
        %s1340 = scalar_lea.vmem %s3, 48
        %v1341 = vld [vmem:[%s1340] sm:$0xff]
        %v1342 = vld [vmem:[%s1340 + $0x8] sm:$0x77]
        %v1343 = vrot.slane %v1145, 1
        %v1344 = vrot.slane %v1147, 2
        %v1345 = vor.u32 %v1343, %v1344
        %v1348 = vunpack.c.l.b16 %v1341
        %v1349 = vunpack.c.h.b16 %v1341
        %v1350 = vunpack.c.l.b16 %v1342
        %v1351 = vunpack.c.h.b16 %v1342
        %v1352 = vpack.c.b16 %v1350, %v1348
        %v1353 = vpack.c.b16 %v1351, %v1349
        %v1355 = vsel %vm1159, %v1345, 0
        %v1358 = vsel %vm942, %v1352, 0
        %v1361 = vsel %vm942, %v1353, 0
        %1363 = vmatprep.subr.bf16.mxu0 0
        %1364 = vmatpush1.bf16.msra.mxu0 0
        %1365 = vmatprep.subr.bf16.mxu0 0
        %1366 = vmatpush1.bf16.msra.mxu0 0
        %1367 = vmatprep.subr.bf16.mxu0 0
        %1368 = vmatpush1.bf16.msra.mxu0 0
        %1369 = vmatprep.subr.bf16.mxu0 0
        %1370 = vmatpush1.bf16.msra.mxu0 0
        %1371 = vmatprep.subr.bf16.mxu0 0
        %1372 = vmatpush1.bf16.msra.mxu0 0
        %1373 = vmatprep.subr.bf16.mxu0 0
        %1374 = vmatpush1.bf16.msra.mxu0 0
        %1375 = vmatprep.subr.bf16.mxu0 0
        %1376 = vmatpush1.bf16.msra.mxu0 0
        %1377 = vmatprep.subr.bf16.mxu0 %v1361
        %1378 = vmatpush1.bf16.msra.mxu0 %v1358
        %1379 = vmatprep.subr.bf16.mxu0 0
        %1380 = vmatpush2.bf16.msra.mxu0 0
        %1381 = vmatprep.subr.bf16.mxu0 0
        %1382 = vmatpush2.bf16.msra.mxu0 0
        %1383 = vmatprep.subr.bf16.mxu0 0
        %1384 = vmatpush2.bf16.msra.mxu0 0
        %1385 = vmatprep.subr.bf16.mxu0 0
        %1386 = vmatpush2.bf16.msra.mxu0 0
        %1387 = vmatprep.subr.bf16.mxu0 0
        %1388 = vmatpush2.bf16.msra.mxu0 0
        %1389 = vmatprep.subr.bf16.mxu0 0
        %1390 = vmatpush2.bf16.msra.mxu0 0
        %1391 = vmatprep.subr.bf16.mxu0 0
        %1392 = vmatpush2.bf16.msra.mxu0 0
        %1393 = vmatprep.subr.bf16.mxu0 0
        %1394 = vmatpush2.bf16.msra.mxu0 0
        %1395 = vmatprep.mubr.bf16.mxu0 0
        %1396 = vmatmul.mubr.bf16.gmra.mxu0 %v1355
        %v1397 = vpop.f32.mrf.mxu0
        %v1398 = vadd.f32 0.0, %v1397
        %v1399 = vpop.f32.mrf.mxu0
        %v1400 = vadd.f32 0.0, %v1399
        %v1401 = vpop.f32.mrf.mxu0
        %v1402 = vadd.f32 0.0, %v1401
        %v1403 = vpop.f32.mrf.mxu0
        %v1404 = vadd.f32 0.0, %v1403
        %1405 = vdwg.mxu0
        %v1406 = vadd.f32 %v1336, %v1398
        %v1407 = vadd.f32 %v1337, %v1400
        %v1408 = vadd.f32 %v1338, %v1402
        %v1409 = vadd.f32 %v1339, %v1404
        %s1410 = scalar_lea.vmem %s3, 64
        %v1411 = vld [vmem:[%s1410] sm:$0xff]
        %v1412 = vld [vmem:[%s1410 + $0x8] sm:$0x77]
        %v1413 = vrot.slane %v1138, 2
        %v1416 = vunpack.c.l.b16 %v1411
        %v1417 = vunpack.c.h.b16 %v1411
        %v1418 = vunpack.c.l.b16 %v1412
        %v1419 = vunpack.c.h.b16 %v1412
        %v1420 = vpack.c.b16 %v1418, %v1416
        %v1421 = vpack.c.b16 %v1419, %v1417
        %v1423 = vsel %vm1159, %v1413, 0
        %v1426 = vsel %vm942, %v1420, 0
        %v1429 = vsel %vm942, %v1421, 0
        %1431 = vmatprep.subr.bf16.mxu0 0
        %1432 = vmatpush1.bf16.msra.mxu0 0
        %1433 = vmatprep.subr.bf16.mxu0 0
        %1434 = vmatpush1.bf16.msra.mxu0 0
        %1435 = vmatprep.subr.bf16.mxu0 0
        %1436 = vmatpush1.bf16.msra.mxu0 0
        %1437 = vmatprep.subr.bf16.mxu0 0
        %1438 = vmatpush1.bf16.msra.mxu0 0
        %1439 = vmatprep.subr.bf16.mxu0 0
        %1440 = vmatpush1.bf16.msra.mxu0 0
        %1441 = vmatprep.subr.bf16.mxu0 0
        %1442 = vmatpush1.bf16.msra.mxu0 0
        %1443 = vmatprep.subr.bf16.mxu0 0
        %1444 = vmatpush1.bf16.msra.mxu0 0
        %1445 = vmatprep.subr.bf16.mxu0 %v1429
        %1446 = vmatpush1.bf16.msra.mxu0 %v1426
        %1447 = vmatprep.subr.bf16.mxu0 0
        %1448 = vmatpush2.bf16.msra.mxu0 0
        %1449 = vmatprep.subr.bf16.mxu0 0
        %1450 = vmatpush2.bf16.msra.mxu0 0
        %1451 = vmatprep.subr.bf16.mxu0 0
        %1452 = vmatpush2.bf16.msra.mxu0 0
        %1453 = vmatprep.subr.bf16.mxu0 0
        %1454 = vmatpush2.bf16.msra.mxu0 0
        %1455 = vmatprep.subr.bf16.mxu0 0
        %1456 = vmatpush2.bf16.msra.mxu0 0
        %1457 = vmatprep.subr.bf16.mxu0 0
        %1458 = vmatpush2.bf16.msra.mxu0 0
        %1459 = vmatprep.subr.bf16.mxu0 0
        %1460 = vmatpush2.bf16.msra.mxu0 0
        %1461 = vmatprep.subr.bf16.mxu0 0
        %1462 = vmatpush2.bf16.msra.mxu0 0
        %1463 = vmatprep.mubr.bf16.mxu0 0
        %1464 = vmatmul.mubr.bf16.gmra.mxu0 %v1423
        %v1465 = vpop.f32.mrf.mxu0
        %v1466 = vadd.f32 0.0, %v1465
        %v1467 = vpop.f32.mrf.mxu0
        %v1468 = vadd.f32 0.0, %v1467
        %v1469 = vpop.f32.mrf.mxu0
        %v1470 = vadd.f32 0.0, %v1469
        %v1471 = vpop.f32.mrf.mxu0
        %v1472 = vadd.f32 0.0, %v1471
        %1473 = vdwg.mxu0
        %v1474 = vadd.f32 %v1406, %v1466
        %v1475 = vadd.f32 %v1407, %v1468
        %v1476 = vadd.f32 %v1408, %v1470
        %v1477 = vadd.f32 %v1409, %v1472
        %s1478 = scalar_lea.vmem %s3, 80
        %v1479 = vld [vmem:[%s1478] sm:$0xff]
        %v1480 = vld [vmem:[%s1478 + $0x8] sm:$0x77]
        %1481 = vrot.lane.b32.xlu0 %v1138, 114
        %v1482 = vpop.permute.xlu0 %1481
        %v1485 = vunpack.c.l.b16 %v1479
        %v1486 = vunpack.c.h.b16 %v1479
        %v1487 = vunpack.c.l.b16 %v1480
        %v1488 = vunpack.c.h.b16 %v1480
        %v1489 = vpack.c.b16 %v1487, %v1485
        %v1490 = vpack.c.b16 %v1488, %v1486
        %v1492 = vsel %vm1159, %v1482, 0
        %v1495 = vsel %vm942, %v1489, 0
        %v1498 = vsel %vm942, %v1490, 0
        %1500 = vmatprep.subr.bf16.mxu0 0
        %1501 = vmatpush1.bf16.msra.mxu0 0
        %1502 = vmatprep.subr.bf16.mxu0 0
        %1503 = vmatpush1.bf16.msra.mxu0 0
        %1504 = vmatprep.subr.bf16.mxu0 0
        %1505 = vmatpush1.bf16.msra.mxu0 0
        %1506 = vmatprep.subr.bf16.mxu0 0
        %1507 = vmatpush1.bf16.msra.mxu0 0
        %1508 = vmatprep.subr.bf16.mxu0 0
        %1509 = vmatpush1.bf16.msra.mxu0 0
        %1510 = vmatprep.subr.bf16.mxu0 0
        %1511 = vmatpush1.bf16.msra.mxu0 0
        %1512 = vmatprep.subr.bf16.mxu0 0
        %1513 = vmatpush1.bf16.msra.mxu0 0
        %1514 = vmatprep.subr.bf16.mxu0 %v1498
        %1515 = vmatpush1.bf16.msra.mxu0 %v1495
        %1516 = vmatprep.subr.bf16.mxu0 0
        %1517 = vmatpush2.bf16.msra.mxu0 0
        %1518 = vmatprep.subr.bf16.mxu0 0
        %1519 = vmatpush2.bf16.msra.mxu0 0
        %1520 = vmatprep.subr.bf16.mxu0 0
        %1521 = vmatpush2.bf16.msra.mxu0 0
        %1522 = vmatprep.subr.bf16.mxu0 0
        %1523 = vmatpush2.bf16.msra.mxu0 0
        %1524 = vmatprep.subr.bf16.mxu0 0
        %1525 = vmatpush2.bf16.msra.mxu0 0
        %1526 = vmatprep.subr.bf16.mxu0 0
        %1527 = vmatpush2.bf16.msra.mxu0 0
        %1528 = vmatprep.subr.bf16.mxu0 0
        %1529 = vmatpush2.bf16.msra.mxu0 0
        %1530 = vmatprep.subr.bf16.mxu0 0
        %1531 = vmatpush2.bf16.msra.mxu0 0
        %1532 = vmatprep.mubr.bf16.mxu0 0
        %1533 = vmatmul.mubr.bf16.gmra.mxu0 %v1492
        %v1534 = vpop.f32.mrf.mxu0
        %v1535 = vadd.f32 0.0, %v1534
        %v1536 = vpop.f32.mrf.mxu0
        %v1537 = vadd.f32 0.0, %v1536
        %v1538 = vpop.f32.mrf.mxu0
        %v1539 = vadd.f32 0.0, %v1538
        %v1540 = vpop.f32.mrf.mxu0
        %v1541 = vadd.f32 0.0, %v1540
        %1542 = vdwg.mxu0
        %v1543 = vadd.f32 %v1474, %v1535
        %v1544 = vadd.f32 %v1475, %v1537
        %v1545 = vadd.f32 %v1476, %v1539
        %v1546 = vadd.f32 %v1477, %v1541
        %s1547 = scalar_lea.vmem %s3, 96
        %v1548 = vld [vmem:[%s1547] sm:$0xff]
        %v1549 = vld [vmem:[%s1547 + $0x8] sm:$0x77]
        %1550 = vrot.lane.b32.xlu0 %v1150, 114
        %v1551 = vpop.permute.xlu0 %1550
        %v1554 = vunpack.c.l.b16 %v1548
        %v1555 = vunpack.c.h.b16 %v1548
        %v1556 = vunpack.c.l.b16 %v1549
        %v1557 = vunpack.c.h.b16 %v1549
        %v1558 = vpack.c.b16 %v1556, %v1554
        %v1559 = vpack.c.b16 %v1557, %v1555
        %v1561 = vsel %vm1159, %v1551, 0
        %v1564 = vsel %vm942, %v1558, 0
        %v1567 = vsel %vm942, %v1559, 0
        %1569 = vmatprep.subr.bf16.mxu0 0
        %1570 = vmatpush1.bf16.msra.mxu0 0
        %1571 = vmatprep.subr.bf16.mxu0 0
        %1572 = vmatpush1.bf16.msra.mxu0 0
        %1573 = vmatprep.subr.bf16.mxu0 0
        %1574 = vmatpush1.bf16.msra.mxu0 0
        %1575 = vmatprep.subr.bf16.mxu0 0
        %1576 = vmatpush1.bf16.msra.mxu0 0
        %1577 = vmatprep.subr.bf16.mxu0 0
        %1578 = vmatpush1.bf16.msra.mxu0 0
        %1579 = vmatprep.subr.bf16.mxu0 0
        %1580 = vmatpush1.bf16.msra.mxu0 0
        %1581 = vmatprep.subr.bf16.mxu0 0
        %1582 = vmatpush1.bf16.msra.mxu0 0
        %1583 = vmatprep.subr.bf16.mxu0 %v1567
        %1584 = vmatpush1.bf16.msra.mxu0 %v1564
        %1585 = vmatprep.subr.bf16.mxu0 0
        %1586 = vmatpush2.bf16.msra.mxu0 0
        %1587 = vmatprep.subr.bf16.mxu0 0
        %1588 = vmatpush2.bf16.msra.mxu0 0
        %1589 = vmatprep.subr.bf16.mxu0 0
        %1590 = vmatpush2.bf16.msra.mxu0 0
        %1591 = vmatprep.subr.bf16.mxu0 0
        %1592 = vmatpush2.bf16.msra.mxu0 0
        %1593 = vmatprep.subr.bf16.mxu0 0
        %1594 = vmatpush2.bf16.msra.mxu0 0
        %1595 = vmatprep.subr.bf16.mxu0 0
        %1596 = vmatpush2.bf16.msra.mxu0 0
        %1597 = vmatprep.subr.bf16.mxu0 0
        %1598 = vmatpush2.bf16.msra.mxu0 0
        %1599 = vmatprep.subr.bf16.mxu0 0
        %1600 = vmatpush2.bf16.msra.mxu0 0
        %1601 = vmatprep.mubr.bf16.mxu0 0
        %1602 = vmatmul.mubr.bf16.gmra.mxu0 %v1561
        %v1603 = vpop.f32.mrf.mxu0
        %v1604 = vadd.f32 0.0, %v1603
        %v1605 = vpop.f32.mrf.mxu0
        %v1606 = vadd.f32 0.0, %v1605
        %v1607 = vpop.f32.mrf.mxu0
        %v1608 = vadd.f32 0.0, %v1607
        %v1609 = vpop.f32.mrf.mxu0
        %v1610 = vadd.f32 0.0, %v1609
        %1611 = vdwg.mxu0
        %v1612 = vadd.f32 %v1543, %v1604
        %v1613 = vadd.f32 %v1544, %v1606
        %v1614 = vadd.f32 %v1545, %v1608
        %v1615 = vadd.f32 %v1546, %v1610
        %s1616 = scalar_lea.vmem %s3, 112
        %v1617 = vld [vmem:[%s1616] sm:$0xff]
        %v1618 = vld [vmem:[%s1616 + $0x8] sm:$0x77]
        %1619 = vrot.lane.b32.xlu0 %v1275, 114
        %v1620 = vpop.permute.xlu0 %1619
        %v1623 = vunpack.c.l.b16 %v1617
        %v1624 = vunpack.c.h.b16 %v1617
        %v1625 = vunpack.c.l.b16 %v1618
        %v1626 = vunpack.c.h.b16 %v1618
        %v1627 = vpack.c.b16 %v1625, %v1623
        %v1628 = vpack.c.b16 %v1626, %v1624
        %v1630 = vsel %vm1159, %v1620, 0
        %v1633 = vsel %vm942, %v1627, 0
        %v1636 = vsel %vm942, %v1628, 0
        %1638 = vmatprep.subr.bf16.mxu0 0
        %1639 = vmatpush1.bf16.msra.mxu0 0
        %1640 = vmatprep.subr.bf16.mxu0 0
        %1641 = vmatpush1.bf16.msra.mxu0 0
        %1642 = vmatprep.subr.bf16.mxu0 0
        %1643 = vmatpush1.bf16.msra.mxu0 0
        %1644 = vmatprep.subr.bf16.mxu0 0
        %1645 = vmatpush1.bf16.msra.mxu0 0
        %1646 = vmatprep.subr.bf16.mxu0 0
        %1647 = vmatpush1.bf16.msra.mxu0 0
        %1648 = vmatprep.subr.bf16.mxu0 0
        %1649 = vmatpush1.bf16.msra.mxu0 0
        %1650 = vmatprep.subr.bf16.mxu0 0
        %1651 = vmatpush1.bf16.msra.mxu0 0
        %1652 = vmatprep.subr.bf16.mxu0 %v1636
        %1653 = vmatpush1.bf16.msra.mxu0 %v1633
        %1654 = vmatprep.subr.bf16.mxu0 0
        %1655 = vmatpush2.bf16.msra.mxu0 0
        %1656 = vmatprep.subr.bf16.mxu0 0
        %1657 = vmatpush2.bf16.msra.mxu0 0
        %1658 = vmatprep.subr.bf16.mxu0 0
        %1659 = vmatpush2.bf16.msra.mxu0 0
        %1660 = vmatprep.subr.bf16.mxu0 0
        %1661 = vmatpush2.bf16.msra.mxu0 0
        %1662 = vmatprep.subr.bf16.mxu0 0
        %1663 = vmatpush2.bf16.msra.mxu0 0
        %1664 = vmatprep.subr.bf16.mxu0 0
        %1665 = vmatpush2.bf16.msra.mxu0 0
        %1666 = vmatprep.subr.bf16.mxu0 0
        %1667 = vmatpush2.bf16.msra.mxu0 0
        %1668 = vmatprep.subr.bf16.mxu0 0
        %1669 = vmatpush2.bf16.msra.mxu0 0
        %1670 = vmatprep.mubr.bf16.mxu0 0
        %1671 = vmatmul.mubr.bf16.gmra.mxu0 %v1630
        %v1672 = vpop.f32.mrf.mxu0
        %v1673 = vadd.f32 0.0, %v1672
        %v1674 = vpop.f32.mrf.mxu0
        %v1675 = vadd.f32 0.0, %v1674
        %v1676 = vpop.f32.mrf.mxu0
        %v1677 = vadd.f32 0.0, %v1676
        %v1678 = vpop.f32.mrf.mxu0
        %v1679 = vadd.f32 0.0, %v1678
        %1680 = vdwg.mxu0
        %v1681 = vadd.f32 %v1612, %v1673
        %v1682 = vadd.f32 %v1613, %v1675
        %v1683 = vadd.f32 %v1614, %v1677
        %v1684 = vadd.f32 %v1615, %v1679
        %s1685 = scalar_lea.vmem %s3, 128
        %v1686 = vld [vmem:[%s1685] sm:$0xff]
        %v1687 = vld [vmem:[%s1685 + $0x8] sm:$0x77]
        %1688 = vrot.lane.b32.xlu0 %v1345, 114
        %v1689 = vpop.permute.xlu0 %1688
        %v1692 = vunpack.c.l.b16 %v1686
        %v1693 = vunpack.c.h.b16 %v1686
        %v1694 = vunpack.c.l.b16 %v1687
        %v1695 = vunpack.c.h.b16 %v1687
        %v1696 = vpack.c.b16 %v1694, %v1692
        %v1697 = vpack.c.b16 %v1695, %v1693
        %v1699 = vsel %vm1159, %v1689, 0
        %v1702 = vsel %vm942, %v1696, 0
        %v1705 = vsel %vm942, %v1697, 0
        %1707 = vmatprep.subr.bf16.mxu0 0
        %1708 = vmatpush1.bf16.msra.mxu0 0
        %1709 = vmatprep.subr.bf16.mxu0 0
        %1710 = vmatpush1.bf16.msra.mxu0 0
        %1711 = vmatprep.subr.bf16.mxu0 0
        %1712 = vmatpush1.bf16.msra.mxu0 0
        %1713 = vmatprep.subr.bf16.mxu0 0
        %1714 = vmatpush1.bf16.msra.mxu0 0
        %1715 = vmatprep.subr.bf16.mxu0 0
        %1716 = vmatpush1.bf16.msra.mxu0 0
        %1717 = vmatprep.subr.bf16.mxu0 0
        %1718 = vmatpush1.bf16.msra.mxu0 0
        %1719 = vmatprep.subr.bf16.mxu0 0
        %1720 = vmatpush1.bf16.msra.mxu0 0
        %1721 = vmatprep.subr.bf16.mxu0 %v1705
        %1722 = vmatpush1.bf16.msra.mxu0 %v1702
        %1723 = vmatprep.subr.bf16.mxu0 0
        %1724 = vmatpush2.bf16.msra.mxu0 0
        %1725 = vmatprep.subr.bf16.mxu0 0
        %1726 = vmatpush2.bf16.msra.mxu0 0
        %1727 = vmatprep.subr.bf16.mxu0 0
        %1728 = vmatpush2.bf16.msra.mxu0 0
        %1729 = vmatprep.subr.bf16.mxu0 0
        %1730 = vmatpush2.bf16.msra.mxu0 0
        %1731 = vmatprep.subr.bf16.mxu0 0
        %1732 = vmatpush2.bf16.msra.mxu0 0
        %1733 = vmatprep.subr.bf16.mxu0 0
        %1734 = vmatpush2.bf16.msra.mxu0 0
        %1735 = vmatprep.subr.bf16.mxu0 0
        %1736 = vmatpush2.bf16.msra.mxu0 0
        %1737 = vmatprep.subr.bf16.mxu0 0
        %1738 = vmatpush2.bf16.msra.mxu0 0
        %1739 = vmatprep.mubr.bf16.mxu0 0
        %1740 = vmatmul.mubr.bf16.gmra.mxu0 %v1699
        %v1741 = vpop.f32.mrf.mxu0
        %v1742 = vadd.f32 0.0, %v1741
        %v1743 = vpop.f32.mrf.mxu0
        %v1744 = vadd.f32 0.0, %v1743
        %v1745 = vpop.f32.mrf.mxu0
        %v1746 = vadd.f32 0.0, %v1745
        %v1747 = vpop.f32.mrf.mxu0
        %v1748 = vadd.f32 0.0, %v1747
        %1749 = vdwg.mxu0
        %v1750 = vadd.f32 %v1681, %v1742
        %v1751 = vadd.f32 %v1682, %v1744
        %v1752 = vadd.f32 %v1683, %v1746
        %v1753 = vadd.f32 %v1684, %v1748
        %s1754 = scalar_lea.vmem %s3, 144
        %v1755 = vld [vmem:[%s1754] sm:$0xff]
        %v1756 = vld [vmem:[%s1754 + $0x8] sm:$0x77]
        %1757 = vrot.lane.b32.xlu0 %v1413, 114
        %v1758 = vpop.permute.xlu0 %1757
        %v1761 = vunpack.c.l.b16 %v1755
        %v1762 = vunpack.c.h.b16 %v1755
        %v1763 = vunpack.c.l.b16 %v1756
        %v1764 = vunpack.c.h.b16 %v1756
        %v1765 = vpack.c.b16 %v1763, %v1761
        %v1766 = vpack.c.b16 %v1764, %v1762
        %v1768 = vsel %vm1159, %v1758, 0
        %v1771 = vsel %vm942, %v1765, 0
        %v1774 = vsel %vm942, %v1766, 0
        %1776 = vmatprep.subr.bf16.mxu0 0
        %1777 = vmatpush1.bf16.msra.mxu0 0
        %1778 = vmatprep.subr.bf16.mxu0 0
        %1779 = vmatpush1.bf16.msra.mxu0 0
        %1780 = vmatprep.subr.bf16.mxu0 0
        %1781 = vmatpush1.bf16.msra.mxu0 0
        %1782 = vmatprep.subr.bf16.mxu0 0
        %1783 = vmatpush1.bf16.msra.mxu0 0
        %1784 = vmatprep.subr.bf16.mxu0 0
        %1785 = vmatpush1.bf16.msra.mxu0 0
        %1786 = vmatprep.subr.bf16.mxu0 0
        %1787 = vmatpush1.bf16.msra.mxu0 0
        %1788 = vmatprep.subr.bf16.mxu0 0
        %1789 = vmatpush1.bf16.msra.mxu0 0
        %1790 = vmatprep.subr.bf16.mxu0 %v1774
        %1791 = vmatpush1.bf16.msra.mxu0 %v1771
        %1792 = vmatprep.subr.bf16.mxu0 0
        %1793 = vmatpush2.bf16.msra.mxu0 0
        %1794 = vmatprep.subr.bf16.mxu0 0
        %1795 = vmatpush2.bf16.msra.mxu0 0
        %1796 = vmatprep.subr.bf16.mxu0 0
        %1797 = vmatpush2.bf16.msra.mxu0 0
        %1798 = vmatprep.subr.bf16.mxu0 0
        %1799 = vmatpush2.bf16.msra.mxu0 0
        %1800 = vmatprep.subr.bf16.mxu0 0
        %1801 = vmatpush2.bf16.msra.mxu0 0
        %1802 = vmatprep.subr.bf16.mxu0 0
        %1803 = vmatpush2.bf16.msra.mxu0 0
        %1804 = vmatprep.subr.bf16.mxu0 0
        %1805 = vmatpush2.bf16.msra.mxu0 0
        %1806 = vmatprep.subr.bf16.mxu0 0
        %1807 = vmatpush2.bf16.msra.mxu0 0
        %1808 = vmatprep.mubr.bf16.mxu0 0
        %1809 = vmatmul.mubr.bf16.gmra.mxu0 %v1768
        %v1810 = vpop.f32.mrf.mxu0
        %v1811 = vadd.f32 0.0, %v1810
        %v1812 = vpop.f32.mrf.mxu0
        %v1813 = vadd.f32 0.0, %v1812
        %v1814 = vpop.f32.mrf.mxu0
        %v1815 = vadd.f32 0.0, %v1814
        %v1816 = vpop.f32.mrf.mxu0
        %v1817 = vadd.f32 0.0, %v1816
        %1818 = vdwg.mxu0
        %v1819 = vadd.f32 %v1750, %v1811
        %v1820 = vadd.f32 %v1751, %v1813
        %v1821 = vadd.f32 %v1752, %v1815
        %v1822 = vadd.f32 %v1753, %v1817
        %v1823 = vld [vmem:[%s4] sm:$0x3]
        %v1825 = vlaneseq
        %v1826 = vshrl.u32 %v1825, 7
        %v1827 = vsub.s32 0, %v1826
        %v1828 = vrot.slane %v1823, %v1827
        %v1829 = vlaneseq
        %v1830 = vshrl.u32 %v1829, 7
        %v1831 = vsub.s32 1, %v1830
        %v1832 = vrot.slane %v1823, %v1831
        %v1835 = vadd.f32 %v1819, %v1828
        %v1836 = vadd.f32 %v1820, %v1832
        %v1837 = vadd.f32 %v1821, %v1828
        %v1838 = vadd.f32 %v1822, %v1832
        %v1839 = vmax.f32 %v1835, 0.0
        %v1840 = vmax.f32 %v1836, 0.0
        %v1841 = vmax.f32 %v1837, 0.0
        %v1842 = vmax.f32 %v1838, 0.0
        %1847 = vrot.lane.b32.xlu0 %v1839, 127
        %v1848 = vpop.permute.xlu0 %1847
        %1849 = vrot.lane.b32.xlu0 %v1840, 127
        %v1850 = vpop.permute.xlu0 %1849
        %1851 = vrot.lane.b32.xlu0 %v1841, 127
        %v1852 = vpop.permute.xlu0 %1851
        %1853 = vrot.lane.b32.xlu0 %v1842, 127
        %v1854 = vpop.permute.xlu0 %1853
        %vm1855 = vcmask 1039360
        %v1856 = vsel %vm1855, %v1848, %v1850
        %v1857 = vsel %vm1855, %v1852, %v1854
        %v1862 = vmax.f32 %v1839, %v1856
        %v1863 = vmax.f32 %v1840, %v1850
        %v1864 = vmax.f32 %v1841, %v1857
        %v1865 = vmax.f32 %v1842, %v1854
        %v1870 = vrot.slane %v1862, 1
        %v1871 = vrot.slane %v1864, 1
        %v1872 = vsel %vm942, %v1870, %v1871
        %v1873 = vrot.slane %v1863, 1
        %v1874 = vrot.slane %v1865, 1
        %v1875 = vsel %vm942, %v1873, %v1874
        %v1880 = vmax.f32 %v1862, %v1872
        %v1881 = vmax.f32 %v1863, %v1875
        %v1882 = vmax.f32 %v1864, %v1871
        %v1883 = vmax.f32 %v1865, %v1874
        %v1884 = vld [vmem:[%s7] sm:$0x1f]
        %vm1885 = vcmask 72704
        %v1887 = vsel %vm1885, %v1884, 0
        %vm1889 = vcmask 1040384
        %v1891 = vsel %vm1889, %v1882, 0
        %v1894 = vsel %vm1889, %v1883, 0
        %1896 = vmatprep.subr.mxu0 0.0
        %1897 = vmatpush1.msra.mxu0 0.0
        %1898 = vmatprep.subr.mxu0 0.0
        %1899 = vmatpush1.msra.mxu0 0.0
        %1900 = vmatprep.subr.mxu0 0.0
        %1901 = vmatpush1.msra.mxu0 0.0
        %1902 = vmatprep.subr.mxu0 0.0
        %1903 = vmatpush1.msra.mxu0 0.0
        %1904 = vmatprep.subr.mxu0 0.0
        %1905 = vmatpush1.msra.mxu0 0.0
        %1906 = vmatprep.subr.mxu0 0.0
        %1907 = vmatpush1.msra.mxu0 0.0
        %1908 = vmatprep.subr.mxu0 0.0
        %1909 = vmatpush1.msra.mxu0 0.0
        %1910 = vmatprep.subr.mxu0 0.0
        %1911 = vmatpush1.msra.mxu0 0.0
        %1912 = vmatprep.subr.mxu0 0.0
        %1913 = vmatpush1.msra.mxu0 0.0
        %1914 = vmatprep.subr.mxu0 0.0
        %1915 = vmatpush1.msra.mxu0 0.0
        %1916 = vmatprep.subr.mxu0 0.0
        %1917 = vmatpush1.msra.mxu0 0.0
        %1918 = vmatprep.subr.mxu0 0.0
        %1919 = vmatpush1.msra.mxu0 0.0
        %1920 = vmatprep.subr.mxu0 0.0
        %1921 = vmatpush1.msra.mxu0 0.0
        %1922 = vmatprep.subr.mxu0 0.0
        %1923 = vmatpush1.msra.mxu0 0.0
        %1924 = vmatprep.subr.mxu0 %v1894
        %1925 = vmatpush1.msra.mxu0 %v1891
        %1926 = vmatprep.subr.mxu0 %v1881
        %1927 = vmatpush1.msra.mxu0 %v1880
        %1928 = vmatprep.subr.mxu0 0.0
        %1929 = vmatpush2.msra.mxu0 0.0
        %1930 = vmatprep.subr.mxu0 0.0
        %1931 = vmatpush2.msra.mxu0 0.0
        %1932 = vmatprep.subr.mxu0 0.0
        %1933 = vmatpush2.msra.mxu0 0.0
        %1934 = vmatprep.subr.mxu0 0.0
        %1935 = vmatpush2.msra.mxu0 0.0
        %1936 = vmatprep.subr.mxu0 0.0
        %1937 = vmatpush2.msra.mxu0 0.0
        %1938 = vmatprep.subr.mxu0 0.0
        %1939 = vmatpush2.msra.mxu0 0.0
        %1940 = vmatprep.subr.mxu0 0.0
        %1941 = vmatpush2.msra.mxu0 0.0
        %1942 = vmatprep.subr.mxu0 0.0
        %1943 = vmatpush2.msra.mxu0 0.0
        %1944 = vmatprep.subr.mxu0 0.0
        %1945 = vmatpush2.msra.mxu0 0.0
        %1946 = vmatprep.subr.mxu0 0.0
        %1947 = vmatpush2.msra.mxu0 0.0
        %1948 = vmatprep.subr.mxu0 0.0
        %1949 = vmatpush2.msra.mxu0 0.0
        %1950 = vmatprep.subr.mxu0 0.0
        %1951 = vmatpush2.msra.mxu0 0.0
        %1952 = vmatprep.subr.mxu0 0.0
        %1953 = vmatpush2.msra.mxu0 0.0
        %1954 = vmatprep.subr.mxu0 0.0
        %1955 = vmatpush2.msra.mxu0 0.0
        %1956 = vmatprep.subr.mxu0 0.0
        %1957 = vmatpush2.msra.mxu0 0.0
        %1958 = vmatprep.subr.mxu0 0.0
        %1959 = vmatpush2.msra.mxu0 0.0
        %1960 = vmatprep.mubr.f32.mxu0 0.0
        %1961 = vmatmul.mubr.f32.gmra.mxu0 %v1887
        %v1962 = vpop.f32.mrf.mxu0
        %v1963 = vadd.f32 0.0, %v1962
        %v1964 = vpop.f32.mrf.mxu0
        %v1965 = vadd.f32 0.0, %v1964
        %1966 = vdwg.mxu0
        %v1967 = vld [vmem:[%s8] sm:$0xff]
        %v1968 = vld [vmem:[%s8 + $0x8] sm:$0xff]
        %v1969 = vld [vmem:[%s8 + $0x10] sm:$0xff]
        %v1970 = vld [vmem:[%s8 + $0x18] sm:$0xff]
        %v1971 = vld [vmem:[%s8 + $0x20] sm:$0xff]
        %v1972 = vld [vmem:[%s8 + $0x28] sm:$0xff]
        %v1973 = vld [vmem:[%s8 + $0x30] sm:$0xff]
        %v1974 = vld [vmem:[%s8 + $0x38] sm:$0xff]
        %v1975 = vld [vmem:[%s8 + $0x40] sm:$0xff]
        %v1976 = vld [vmem:[%s8 + $0x48] sm:$0xff]
        %v1977 = vld [vmem:[%s8 + $0x50] sm:$0xff]
        %v1978 = vld [vmem:[%s8 + $0x58] sm:$0xff]
        %v1979 = vld [vmem:[%s8 + $0x60] sm:$0xff]
        %v1980 = vld [vmem:[%s8 + $0x68] sm:$0xff]
        %v1981 = vld [vmem:[%s8 + $0x70] sm:$0xff]
        %v1982 = vld [vmem:[%s8 + $0x78] sm:$0xff]
        %v1983 = vld [vmem:[%s8 + $0x80] sm:$0xff]
        %v1984 = vld [vmem:[%s8 + $0x88] sm:$0xff]
        %v1985 = vld [vmem:[%s8 + $0x90] sm:$0xff]
        %v1986 = vld [vmem:[%s8 + $0x98] sm:$0x7f]
        %vm1987 = vcmask 252928
        %v1989 = vsel %vm1987, %v1965, 0
        %v1992 = vsel %vm942, %v1986, 0
        %1994 = vmatprep.subr.mxu0 0.0
        %1995 = vmatpush1.msra.mxu0 %v1982
        %1996 = vmatprep.subr.mxu0 0.0
        %1997 = vmatpush1.msra.mxu0 %v1981
        %1998 = vmatprep.subr.mxu0 0.0
        %1999 = vmatpush1.msra.mxu0 %v1980
        %2000 = vmatprep.subr.mxu0 0.0
        %2001 = vmatpush1.msra.mxu0 %v1979
        %2002 = vmatprep.subr.mxu0 0.0
        %2003 = vmatpush1.msra.mxu0 %v1978
        %2004 = vmatprep.subr.mxu0 0.0
        %2005 = vmatpush1.msra.mxu0 %v1977
        %2006 = vmatprep.subr.mxu0 0.0
        %2007 = vmatpush1.msra.mxu0 %v1976
        %2008 = vmatprep.subr.mxu0 0.0
        %2009 = vmatpush1.msra.mxu0 %v1975
        %2010 = vmatprep.subr.mxu0 0.0
        %2011 = vmatpush1.msra.mxu0 %v1974
        %2012 = vmatprep.subr.mxu0 0.0
        %2013 = vmatpush1.msra.mxu0 %v1973
        %2014 = vmatprep.subr.mxu0 0.0
        %2015 = vmatpush1.msra.mxu0 %v1972
        %2016 = vmatprep.subr.mxu0 0.0
        %2017 = vmatpush1.msra.mxu0 %v1971
        %2018 = vmatprep.subr.mxu0 0.0
        %2019 = vmatpush1.msra.mxu0 %v1970
        %2020 = vmatprep.subr.mxu0 0.0
        %2021 = vmatpush1.msra.mxu0 %v1969
        %2022 = vmatprep.subr.mxu0 0.0
        %2023 = vmatpush1.msra.mxu0 %v1968
        %2024 = vmatprep.subr.mxu0 0.0
        %2025 = vmatpush1.msra.mxu0 %v1967
        %2026 = vmatprep.subr.mxu0 0.0
        %2027 = vmatpush2.msra.mxu0 0.0
        %2028 = vmatprep.subr.mxu0 0.0
        %2029 = vmatpush2.msra.mxu0 0.0
        %2030 = vmatprep.subr.mxu0 0.0
        %2031 = vmatpush2.msra.mxu0 0.0
        %2032 = vmatprep.subr.mxu0 0.0
        %2033 = vmatpush2.msra.mxu0 0.0
        %2034 = vmatprep.subr.mxu0 0.0
        %2035 = vmatpush2.msra.mxu0 0.0
        %2036 = vmatprep.subr.mxu0 0.0
        %2037 = vmatpush2.msra.mxu0 0.0
        %2038 = vmatprep.subr.mxu0 0.0
        %2039 = vmatpush2.msra.mxu0 0.0
        %2040 = vmatprep.subr.mxu0 0.0
        %2041 = vmatpush2.msra.mxu0 0.0
        %2042 = vmatprep.subr.mxu0 0.0
        %2043 = vmatpush2.msra.mxu0 0.0
        %2044 = vmatprep.subr.mxu0 0.0
        %2045 = vmatpush2.msra.mxu0 0.0
        %2046 = vmatprep.subr.mxu0 0.0
        %2047 = vmatpush2.msra.mxu0 0.0
        %2048 = vmatprep.subr.mxu0 0.0
        %2049 = vmatpush2.msra.mxu0 0.0
        %2050 = vmatprep.subr.mxu0 0.0
        %2051 = vmatpush2.msra.mxu0 %v1992
        %2052 = vmatprep.subr.mxu0 0.0
        %2053 = vmatpush2.msra.mxu0 %v1985
        %2054 = vmatprep.subr.mxu0 0.0
        %2055 = vmatpush2.msra.mxu0 %v1984
        %2056 = vmatprep.subr.mxu0 0.0
        %2057 = vmatpush2.msra.mxu0 %v1983
        %2058 = vmatprep.mubr.f32.mxu0 %v1989
        %2059 = vmatmul.mubr.f32.gmra.mxu0 %v1963
        %v2060 = vpop.f32.mrf.mxu0
        %v2061 = vadd.f32 0.0, %v2060
        %v2062 = vpop.f32.mrf.mxu0
        %2063 = vdwg.mxu0
        %v2064 = vpack.c.bf16 %v2061, %v2061
        %v2065 = vld [vmem:[%s9] sm:$0xf]
        %v2066 = vld [vmem:[%s9 + $0x4] sm:$0xf]
        %v2067 = vld [vmem:[%s9 + $0x8] sm:$0xf]
        %v2068 = vld [vmem:[%s9 + $0xc] sm:$0xf]
        %v2069 = vld [vmem:[%s9 + $0x10] sm:$0xf]
        %v2070 = vld [vmem:[%s9 + $0x14] sm:$0xf]
        %v2071 = vld [vmem:[%s9 + $0x18] sm:$0xf]
        %v2072 = vld [vmem:[%s9 + $0x1c] sm:$0xf]
        %v2073 = vld [vmem:[%s9 + $0x20] sm:$0xf]
        %v2074 = vld [vmem:[%s9 + $0x24] sm:$0xf]
        %s2075 = scalar_lea.vmem %s9, 40
        %v2076 = vld [vmem:[%s2075] sm:$0xf]
        %v2077 = vld [vmem:[%s2075 + $0x4] sm:$0xf]
        %v2078 = vld [vmem:[%s2075 + $0x8] sm:$0xf]
        %v2079 = vld [vmem:[%s2075 + $0xc] sm:$0xf]
        %v2080 = vld [vmem:[%s2075 + $0x10] sm:$0xf]
        %v2081 = vld [vmem:[%s2075 + $0x14] sm:$0xf]
        %v2082 = vld [vmem:[%s2075 + $0x18] sm:$0xf]
        %v2083 = vld [vmem:[%s2075 + $0x1c] sm:$0xf]
        %v2084 = vld [vmem:[%s2075 + $0x20] sm:$0xf]
        %v2085 = vld [vmem:[%s2075 + $0x24] sm:$0xf]
        %v2087 = vshrl.u32 %v2064, 16
        %v2099 = vunpack.c.l.b16 %v2076
        %v2100 = vunpack.c.l.b16 %v2077
        %v2101 = vunpack.c.l.b16 %v2078
        %v2102 = vunpack.c.l.b16 %v2079
        %v2103 = vunpack.c.l.b16 %v2080
        %v2104 = vunpack.c.l.b16 %v2081
        %v2105 = vunpack.c.l.b16 %v2082
        %v2106 = vunpack.c.l.b16 %v2083
        %v2107 = vunpack.c.l.b16 %v2084
        %v2108 = vunpack.c.l.b16 %v2085
        %v2109 = vpack.c.b16 %v2100, %v2099
        %v2110 = vpack.c.b16 %v2102, %v2101
        %v2111 = vpack.c.b16 %v2104, %v2103
        %v2112 = vpack.c.b16 %v2106, %v2105
        %v2113 = vpack.c.b16 %v2108, %v2107
        %vm2119 = vcmask 654336
        %v2121 = vsel %vm2119, %v2087, 0
        %2123 = vmatprep.subr.bf16.mxu0 0
        %2124 = vmatpush1.bf16.msra.mxu0 0
        %2125 = vmatprep.subr.bf16.mxu0 0
        %2126 = vmatpush1.bf16.msra.mxu0 0
        %2127 = vmatprep.subr.bf16.mxu0 0
        %2128 = vmatpush1.bf16.msra.mxu0 0
        %2129 = vmatprep.subr.bf16.mxu0 0
        %2130 = vmatpush1.bf16.msra.mxu0 %v2113
        %2131 = vmatprep.subr.bf16.mxu0 0
        %2132 = vmatpush1.bf16.msra.mxu0 %v2112
        %2133 = vmatprep.subr.bf16.mxu0 0
        %2134 = vmatpush1.bf16.msra.mxu0 %v2111
        %2135 = vmatprep.subr.bf16.mxu0 0
        %2136 = vmatpush1.bf16.msra.mxu0 %v2110
        %2137 = vmatprep.subr.bf16.mxu0 0
        %2138 = vmatpush1.bf16.msra.mxu0 %v2109
        %2139 = vmatprep.subr.bf16.mxu0 0
        %2140 = vmatpush2.bf16.msra.mxu0 0
        %2141 = vmatprep.subr.bf16.mxu0 0
        %2142 = vmatpush2.bf16.msra.mxu0 0
        %2143 = vmatprep.subr.bf16.mxu0 0
        %2144 = vmatpush2.bf16.msra.mxu0 0
        %2145 = vmatprep.subr.bf16.mxu0 0
        %2146 = vmatpush2.bf16.msra.mxu0 0
        %2147 = vmatprep.subr.bf16.mxu0 0
        %2148 = vmatpush2.bf16.msra.mxu0 0
        %2149 = vmatprep.subr.bf16.mxu0 0
        %2150 = vmatpush2.bf16.msra.mxu0 0
        %2151 = vmatprep.subr.bf16.mxu0 0
        %2152 = vmatpush2.bf16.msra.mxu0 0
        %2153 = vmatprep.subr.bf16.mxu0 0
        %2154 = vmatpush2.bf16.msra.mxu0 0
        %2155 = vmatprep.mubr.bf16.mxu0 0
        %2156 = vmatmul.mubr.bf16.gmra.mxu0 %v2121
        %v2157 = vpop.f32.mrf.mxu0
        %v2158 = vadd.f32 0.0, %v2157
        %v2159 = vpop.f32.mrf.mxu0
        %v2160 = vpop.f32.mrf.mxu0
        %v2161 = vpop.f32.mrf.mxu0
        %2162 = vdwg.mxu0
        %v2173 = vunpack.c.l.b16 %v2065
        %v2174 = vunpack.c.l.b16 %v2066
        %v2175 = vunpack.c.l.b16 %v2067
        %v2176 = vunpack.c.l.b16 %v2068
        %v2177 = vunpack.c.l.b16 %v2069
        %v2178 = vunpack.c.l.b16 %v2070
        %v2179 = vunpack.c.l.b16 %v2071
        %v2180 = vunpack.c.l.b16 %v2072
        %v2181 = vunpack.c.l.b16 %v2073
        %v2182 = vunpack.c.l.b16 %v2074
        %v2183 = vpack.c.b16 %v2174, %v2173
        %v2184 = vpack.c.b16 %v2176, %v2175
        %v2185 = vpack.c.b16 %v2178, %v2177
        %v2186 = vpack.c.b16 %v2180, %v2179
        %v2187 = vpack.c.b16 %v2182, %v2181
        %v2193 = vsel %vm2119, %v2064, 0
        %2195 = vmatprep.subr.bf16.mxu0 0
        %2196 = vmatpush1.bf16.msra.mxu0 0
        %2197 = vmatprep.subr.bf16.mxu0 0
        %2198 = vmatpush1.bf16.msra.mxu0 0
        %2199 = vmatprep.subr.bf16.mxu0 0
        %2200 = vmatpush1.bf16.msra.mxu0 0
        %2201 = vmatprep.subr.bf16.mxu0 0
        %2202 = vmatpush1.bf16.msra.mxu0 %v2187
        %2203 = vmatprep.subr.bf16.mxu0 0
        %2204 = vmatpush1.bf16.msra.mxu0 %v2186
        %2205 = vmatprep.subr.bf16.mxu0 0
        %2206 = vmatpush1.bf16.msra.mxu0 %v2185
        %2207 = vmatprep.subr.bf16.mxu0 0
        %2208 = vmatpush1.bf16.msra.mxu0 %v2184
        %2209 = vmatprep.subr.bf16.mxu0 0
        %2210 = vmatpush1.bf16.msra.mxu0 %v2183
        %2211 = vmatprep.subr.bf16.mxu0 0
        %2212 = vmatpush2.bf16.msra.mxu0 0
        %2213 = vmatprep.subr.bf16.mxu0 0
        %2214 = vmatpush2.bf16.msra.mxu0 0
        %2215 = vmatprep.subr.bf16.mxu0 0
        %2216 = vmatpush2.bf16.msra.mxu0 0
        %2217 = vmatprep.subr.bf16.mxu0 0
        %2218 = vmatpush2.bf16.msra.mxu0 0
        %2219 = vmatprep.subr.bf16.mxu0 0
        %2220 = vmatpush2.bf16.msra.mxu0 0
        %2221 = vmatprep.subr.bf16.mxu0 0
        %2222 = vmatpush2.bf16.msra.mxu0 0
        %2223 = vmatprep.subr.bf16.mxu0 0
        %2224 = vmatpush2.bf16.msra.mxu0 0
        %2225 = vmatprep.subr.bf16.mxu0 0
        %2226 = vmatpush2.bf16.msra.mxu0 0
        %2227 = vmatprep.mubr.bf16.mxu0 0
        %2228 = vmatmul.mubr.bf16.gmra.mxu0 %v2193
        %v2229 = vpop.f32.mrf.mxu0
        %v2230 = vadd.f32 %v2158, %v2229
        %v2231 = vpop.f32.mrf.mxu0
        %v2232 = vpop.f32.mrf.mxu0
        %v2233 = vpop.f32.mrf.mxu0
        %2234 = vdwg.mxu0
        %s2235 = scalar_lea.vmem %s9, 80
        %v2236 = vld [vmem:[%s2235] sm:$0xf]
        %v2237 = vld [vmem:[%s2235 + $0x4] sm:$0xf]
        %v2238 = vld [vmem:[%s2235 + $0x8] sm:$0xf]
        %v2239 = vld [vmem:[%s2235 + $0xc] sm:$0xf]
        %v2240 = vld [vmem:[%s2235 + $0x10] sm:$0xf]
        %v2241 = vld [vmem:[%s2235 + $0x14] sm:$0xf]
        %v2242 = vld [vmem:[%s2235 + $0x18] sm:$0xf]
        %v2243 = vld [vmem:[%s2235 + $0x1c] sm:$0xf]
        %v2244 = vld [vmem:[%s2235 + $0x20] sm:$0xf]
        %v2245 = vld [vmem:[%s2235 + $0x24] sm:$0xf]
        %v2247 = vrot.slane %v2064, 1
        %v2258 = vunpack.c.l.b16 %v2236
        %v2259 = vunpack.c.l.b16 %v2237
        %v2260 = vunpack.c.l.b16 %v2238
        %v2261 = vunpack.c.l.b16 %v2239
        %v2262 = vunpack.c.l.b16 %v2240
        %v2263 = vunpack.c.l.b16 %v2241
        %v2264 = vunpack.c.l.b16 %v2242
        %v2265 = vunpack.c.l.b16 %v2243
        %v2266 = vunpack.c.l.b16 %v2244
        %v2267 = vunpack.c.l.b16 %v2245
        %v2268 = vpack.c.b16 %v2259, %v2258
        %v2269 = vpack.c.b16 %v2261, %v2260
        %v2270 = vpack.c.b16 %v2263, %v2262
        %v2271 = vpack.c.b16 %v2265, %v2264
        %v2272 = vpack.c.b16 %v2267, %v2266
        %v2279 = vsel %vm2119, %v2247, 0
        %2281 = vmatprep.subr.bf16.mxu0 0
        %2282 = vmatpush1.bf16.msra.mxu0 0
        %2283 = vmatprep.subr.bf16.mxu0 0
        %2284 = vmatpush1.bf16.msra.mxu0 0
        %2285 = vmatprep.subr.bf16.mxu0 0
        %2286 = vmatpush1.bf16.msra.mxu0 0
        %2287 = vmatprep.subr.bf16.mxu0 0
        %2288 = vmatpush1.bf16.msra.mxu0 %v2272
        %2289 = vmatprep.subr.bf16.mxu0 0
        %2290 = vmatpush1.bf16.msra.mxu0 %v2271
        %2291 = vmatprep.subr.bf16.mxu0 0
        %2292 = vmatpush1.bf16.msra.mxu0 %v2270
        %2293 = vmatprep.subr.bf16.mxu0 0
        %2294 = vmatpush1.bf16.msra.mxu0 %v2269
        %2295 = vmatprep.subr.bf16.mxu0 0
        %2296 = vmatpush1.bf16.msra.mxu0 %v2268
        %2297 = vmatprep.subr.bf16.mxu0 0
        %2298 = vmatpush2.bf16.msra.mxu0 0
        %2299 = vmatprep.subr.bf16.mxu0 0
        %2300 = vmatpush2.bf16.msra.mxu0 0
        %2301 = vmatprep.subr.bf16.mxu0 0
        %2302 = vmatpush2.bf16.msra.mxu0 0
        %2303 = vmatprep.subr.bf16.mxu0 0
        %2304 = vmatpush2.bf16.msra.mxu0 0
        %2305 = vmatprep.subr.bf16.mxu0 0
        %2306 = vmatpush2.bf16.msra.mxu0 0
        %2307 = vmatprep.subr.bf16.mxu0 0
        %2308 = vmatpush2.bf16.msra.mxu0 0
        %2309 = vmatprep.subr.bf16.mxu0 0
        %2310 = vmatpush2.bf16.msra.mxu0 0
        %2311 = vmatprep.subr.bf16.mxu0 0
        %2312 = vmatpush2.bf16.msra.mxu0 0
        %2313 = vmatprep.mubr.bf16.mxu0 0
        %2314 = vmatmul.mubr.bf16.gmra.mxu0 %v2279
        %v2315 = vpop.f32.mrf.mxu0
        %v2316 = vadd.f32 0.0, %v2315
        %v2317 = vpop.f32.mrf.mxu0
        %v2318 = vpop.f32.mrf.mxu0
        %v2319 = vpop.f32.mrf.mxu0
        %2320 = vdwg.mxu0
        %v2321 = vadd.f32 %v2230, %v2316
        %s2322 = scalar_lea.vmem %s9, 120
        %v2323 = vld [vmem:[%s2322] sm:$0xf]
        %v2324 = vld [vmem:[%s2322 + $0x4] sm:$0xf]
        %v2325 = vld [vmem:[%s2322 + $0x8] sm:$0xf]
        %v2326 = vld [vmem:[%s2322 + $0xc] sm:$0xf]
        %v2327 = vld [vmem:[%s2322 + $0x10] sm:$0xf]
        %v2328 = vld [vmem:[%s2322 + $0x14] sm:$0xf]
        %v2329 = vld [vmem:[%s2322 + $0x18] sm:$0xf]
        %v2330 = vld [vmem:[%s2322 + $0x1c] sm:$0xf]
        %v2331 = vld [vmem:[%s2322 + $0x20] sm:$0xf]
        %v2332 = vld [vmem:[%s2322 + $0x24] sm:$0xf]
        %v2333 = vrot.slane %v2087, 1
        %v2344 = vunpack.c.l.b16 %v2323
        %v2345 = vunpack.c.l.b16 %v2324
        %v2346 = vunpack.c.l.b16 %v2325
        %v2347 = vunpack.c.l.b16 %v2326
        %v2348 = vunpack.c.l.b16 %v2327
        %v2349 = vunpack.c.l.b16 %v2328
        %v2350 = vunpack.c.l.b16 %v2329
        %v2351 = vunpack.c.l.b16 %v2330
        %v2352 = vunpack.c.l.b16 %v2331
        %v2353 = vunpack.c.l.b16 %v2332
        %v2354 = vpack.c.b16 %v2345, %v2344
        %v2355 = vpack.c.b16 %v2347, %v2346
        %v2356 = vpack.c.b16 %v2349, %v2348
        %v2357 = vpack.c.b16 %v2351, %v2350
        %v2358 = vpack.c.b16 %v2353, %v2352
        %v2365 = vsel %vm2119, %v2333, 0
        %2367 = vmatprep.subr.bf16.mxu0 0
        %2368 = vmatpush1.bf16.msra.mxu0 0
        %2369 = vmatprep.subr.bf16.mxu0 0
        %2370 = vmatpush1.bf16.msra.mxu0 0
        %2371 = vmatprep.subr.bf16.mxu0 0
        %2372 = vmatpush1.bf16.msra.mxu0 0
        %2373 = vmatprep.subr.bf16.mxu0 0
        %2374 = vmatpush1.bf16.msra.mxu0 %v2358
        %2375 = vmatprep.subr.bf16.mxu0 0
        %2376 = vmatpush1.bf16.msra.mxu0 %v2357
        %2377 = vmatprep.subr.bf16.mxu0 0
        %2378 = vmatpush1.bf16.msra.mxu0 %v2356
        %2379 = vmatprep.subr.bf16.mxu0 0
        %2380 = vmatpush1.bf16.msra.mxu0 %v2355
        %2381 = vmatprep.subr.bf16.mxu0 0
        %2382 = vmatpush1.bf16.msra.mxu0 %v2354
        %2383 = vmatprep.subr.bf16.mxu0 0
        %2384 = vmatpush2.bf16.msra.mxu0 0
        %2385 = vmatprep.subr.bf16.mxu0 0
        %2386 = vmatpush2.bf16.msra.mxu0 0
        %2387 = vmatprep.subr.bf16.mxu0 0
        %2388 = vmatpush2.bf16.msra.mxu0 0
        %2389 = vmatprep.subr.bf16.mxu0 0
        %2390 = vmatpush2.bf16.msra.mxu0 0
        %2391 = vmatprep.subr.bf16.mxu0 0
        %2392 = vmatpush2.bf16.msra.mxu0 0
        %2393 = vmatprep.subr.bf16.mxu0 0
        %2394 = vmatpush2.bf16.msra.mxu0 0
        %2395 = vmatprep.subr.bf16.mxu0 0
        %2396 = vmatpush2.bf16.msra.mxu0 0
        %2397 = vmatprep.subr.bf16.mxu0 0
        %2398 = vmatpush2.bf16.msra.mxu0 0
        %2399 = vmatprep.mubr.bf16.mxu0 0
        %2400 = vmatmul.mubr.bf16.gmra.mxu0 %v2365
        %v2401 = vpop.f32.mrf.mxu0
        %v2402 = vadd.f32 0.0, %v2401
        %v2403 = vpop.f32.mrf.mxu0
        %v2404 = vpop.f32.mrf.mxu0
        %v2405 = vpop.f32.mrf.mxu0
        %2406 = vdwg.mxu0
        %v2407 = vadd.f32 %v2321, %v2402
        %s2408 = scalar_lea.vmem %s9, 160
        %v2409 = vld [vmem:[%s2408] sm:$0xf]
        %v2410 = vld [vmem:[%s2408 + $0x4] sm:$0xf]
        %v2411 = vld [vmem:[%s2408 + $0x8] sm:$0xf]
        %v2412 = vld [vmem:[%s2408 + $0xc] sm:$0xf]
        %v2413 = vld [vmem:[%s2408 + $0x10] sm:$0xf]
        %v2414 = vld [vmem:[%s2408 + $0x14] sm:$0xf]
        %v2415 = vld [vmem:[%s2408 + $0x18] sm:$0xf]
        %v2416 = vld [vmem:[%s2408 + $0x1c] sm:$0xf]
        %v2417 = vld [vmem:[%s2408 + $0x20] sm:$0xf]
        %v2418 = vld [vmem:[%s2408 + $0x24] sm:$0xf]
        %v2419 = vrot.slane %v2064, 2
        %v2430 = vunpack.c.l.b16 %v2409
        %v2431 = vunpack.c.l.b16 %v2410
        %v2432 = vunpack.c.l.b16 %v2411
        %v2433 = vunpack.c.l.b16 %v2412
        %v2434 = vunpack.c.l.b16 %v2413
        %v2435 = vunpack.c.l.b16 %v2414
        %v2436 = vunpack.c.l.b16 %v2415
        %v2437 = vunpack.c.l.b16 %v2416
        %v2438 = vunpack.c.l.b16 %v2417
        %v2439 = vunpack.c.l.b16 %v2418
        %v2440 = vpack.c.b16 %v2431, %v2430
        %v2441 = vpack.c.b16 %v2433, %v2432
        %v2442 = vpack.c.b16 %v2435, %v2434
        %v2443 = vpack.c.b16 %v2437, %v2436
        %v2444 = vpack.c.b16 %v2439, %v2438
        %v2451 = vsel %vm2119, %v2419, 0
        %2453 = vmatprep.subr.bf16.mxu0 0
        %2454 = vmatpush1.bf16.msra.mxu0 0
        %2455 = vmatprep.subr.bf16.mxu0 0
        %2456 = vmatpush1.bf16.msra.mxu0 0
        %2457 = vmatprep.subr.bf16.mxu0 0
        %2458 = vmatpush1.bf16.msra.mxu0 0
        %2459 = vmatprep.subr.bf16.mxu0 0
        %2460 = vmatpush1.bf16.msra.mxu0 %v2444
        %2461 = vmatprep.subr.bf16.mxu0 0
        %2462 = vmatpush1.bf16.msra.mxu0 %v2443
        %2463 = vmatprep.subr.bf16.mxu0 0
        %2464 = vmatpush1.bf16.msra.mxu0 %v2442
        %2465 = vmatprep.subr.bf16.mxu0 0
        %2466 = vmatpush1.bf16.msra.mxu0 %v2441
        %2467 = vmatprep.subr.bf16.mxu0 0
        %2468 = vmatpush1.bf16.msra.mxu0 %v2440
        %2469 = vmatprep.subr.bf16.mxu0 0
        %2470 = vmatpush2.bf16.msra.mxu0 0
        %2471 = vmatprep.subr.bf16.mxu0 0
        %2472 = vmatpush2.bf16.msra.mxu0 0
        %2473 = vmatprep.subr.bf16.mxu0 0
        %2474 = vmatpush2.bf16.msra.mxu0 0
        %2475 = vmatprep.subr.bf16.mxu0 0
        %2476 = vmatpush2.bf16.msra.mxu0 0
        %2477 = vmatprep.subr.bf16.mxu0 0
        %2478 = vmatpush2.bf16.msra.mxu0 0
        %2479 = vmatprep.subr.bf16.mxu0 0
        %2480 = vmatpush2.bf16.msra.mxu0 0
        %2481 = vmatprep.subr.bf16.mxu0 0
        %2482 = vmatpush2.bf16.msra.mxu0 0
        %2483 = vmatprep.subr.bf16.mxu0 0
        %2484 = vmatpush2.bf16.msra.mxu0 0
        %2485 = vmatprep.mubr.bf16.mxu0 0
        %2486 = vmatmul.mubr.bf16.gmra.mxu0 %v2451
        %v2487 = vpop.f32.mrf.mxu0
        %v2488 = vadd.f32 0.0, %v2487
        %v2489 = vpop.f32.mrf.mxu0
        %v2490 = vpop.f32.mrf.mxu0
        %v2491 = vpop.f32.mrf.mxu0
        %2492 = vdwg.mxu0
        %v2493 = vadd.f32 %v2407, %v2488
        %v2494 = vld [vmem:[%s10] sm:$0x1]
        %v2495 = vadd.f32 %v2493, %v2494
        %v2496 = vmax.f32 %v2495, 0.0
        %v2497 = vpack.c.bf16 %v2496, %v2496
        %v2498 = vld [vmem:[%s11] sm:$0xf]
        %v2499 = vld [vmem:[%s11 + $0x4] sm:$0xf]
        %v2500 = vld [vmem:[%s11 + $0x8] sm:$0xf]
        %v2501 = vld [vmem:[%s11 + $0xc] sm:$0xf]
        %v2502 = vld [vmem:[%s11 + $0x10] sm:$0xf]
        %v2503 = vld [vmem:[%s11 + $0x14] sm:$0xf]
        %v2504 = vld [vmem:[%s11 + $0x18] sm:$0xf]
        %v2505 = vld [vmem:[%s11 + $0x1c] sm:$0xf]
        %v2506 = vld [vmem:[%s12] sm:$0x1]
        %v2515 = vunpack.c.l.b16 %v2498
        %v2516 = vunpack.c.l.b16 %v2499
        %v2517 = vunpack.c.l.b16 %v2500
        %v2518 = vunpack.c.l.b16 %v2501
        %v2519 = vunpack.c.l.b16 %v2502
        %v2520 = vunpack.c.l.b16 %v2503
        %v2521 = vunpack.c.l.b16 %v2504
        %v2522 = vunpack.c.l.b16 %v2505
        %v2523 = vpack.c.b16 %v2516, %v2515
        %v2524 = vpack.c.b16 %v2518, %v2517
        %v2525 = vpack.c.b16 %v2520, %v2519
        %v2526 = vpack.c.b16 %v2522, %v2521
        %vm2531 = vcmask 523264
        %v2533 = vsel %vm2531, %v2497, 0
        %2535 = vmatprep.subr.bf16.mxu0 0
        %2536 = vmatpush1.bf16.msra.mxu0 0
        %2537 = vmatprep.subr.bf16.mxu0 0
        %2538 = vmatpush1.bf16.msra.mxu0 0
        %2539 = vmatprep.subr.bf16.mxu0 0
        %2540 = vmatpush1.bf16.msra.mxu0 0
        %2541 = vmatprep.subr.bf16.mxu0 0
        %2542 = vmatpush1.bf16.msra.mxu0 0
        %2543 = vmatprep.subr.bf16.mxu0 0
        %2544 = vmatpush1.bf16.msra.mxu0 %v2526
        %2545 = vmatprep.subr.bf16.mxu0 0
        %2546 = vmatpush1.bf16.msra.mxu0 %v2525
        %2547 = vmatprep.subr.bf16.mxu0 0
        %2548 = vmatpush1.bf16.msra.mxu0 %v2524
        %2549 = vmatprep.subr.bf16.mxu0 0
        %2550 = vmatpush1.bf16.msra.mxu0 %v2523
        %2551 = vmatprep.subr.bf16.mxu0 0
        %2552 = vmatpush2.bf16.msra.mxu0 0
        %2553 = vmatprep.subr.bf16.mxu0 0
        %2554 = vmatpush2.bf16.msra.mxu0 0
        %2555 = vmatprep.subr.bf16.mxu0 0
        %2556 = vmatpush2.bf16.msra.mxu0 0
        %2557 = vmatprep.subr.bf16.mxu0 0
        %2558 = vmatpush2.bf16.msra.mxu0 0
        %2559 = vmatprep.subr.bf16.mxu0 0
        %2560 = vmatpush2.bf16.msra.mxu0 0
        %2561 = vmatprep.subr.bf16.mxu0 0
        %2562 = vmatpush2.bf16.msra.mxu0 0
        %2563 = vmatprep.subr.bf16.mxu0 0
        %2564 = vmatpush2.bf16.msra.mxu0 0
        %2565 = vmatprep.subr.bf16.mxu0 0
        %2566 = vmatpush2.bf16.msra.mxu0 0
        %2567 = vmatprep.mubr.bf16.mxu0 0
        %2568 = vmatmul.mubr.bf16.gmra.mxu0 %v2533
        %v2569 = vpop.f32.mrf.mxu0
        %v2570 = vadd.f32 %v2506, %v2569
        %v2571 = vpop.f32.mrf.mxu0
        %v2572 = vpop.f32.mrf.mxu0
        %v2573 = vpop.f32.mrf.mxu0
        %2574 = vdwg.mxu0
        %vm2575 = vcmask 73728
        %v2576 = vsel %vm2575, %v2570, 0.0
        %2577 = vadd.xlane.f32.xlu0 %v2576
        %v2578 = vpop.xlane.xlu0 %2577
        %v2579 = vmul.f32 %v2578, 0.1
        %v2580 = vtanh.pop %v2579
        %v2581 = vld [vmem:[%s13] sm:$0x1]
        %v2582 = vmul.f32 %v2580, %v2581
        %v2583 = vld [vmem:[%s14] sm:$0x1]
        %v2584 = vadd.f32 %v2582, %v2583
        %2585 = vst.msk [vmem:[%s486] sm:$0x1] %vm2575, %v2584
        %s2586 = sand.u32 %s357, 1
        %s2587 = scalar_lea.sflag [#allocation3], %s2586
        %s2588 = sand.u32 %s357, 1
        %s2589 = scalar_lea.vmem [#allocation2], %s2588
        // Predicated region
        $region81: #{net_forward.1} parent=79 // pred_check
          %p2590 = pneg %p367
        $region82: #{net_forward.1} parent=79 // pred_check_branch
          %2592 = sbr.rel (%p2590) target = $region84
        $region83: #{net_forward.1} parent=79 // pred_region
          %s2594 = ssub.s32 16, 16
          %2595 = vsyncadd %s2587, %s2594
          %s2596 = smul.addr %s29, 16
          %s2597 = scalar_lea.hbm %s15, %s2596
          %s2599 = sshll.u32 %s2589, 4
          %s2600 = int_to_ptr.vmem [resolvable:$true] %s2599
          %2602 = dma.vmem_to_hbm [thread:$0]  %s2600, 16, %s2597, %s2587
        $region84: #{net_forward.1} parent=79 // pred_fallthru
          _
      $region80: #{net_forward.1} parent=5 // pred_fallthru
        _
      %p2603 = scmp.le.s32.totalorder 2, %s24
      // Predicated region
      $region85: #{net_forward.1} parent=5 // pred_check
        %p2604 = pneg %p2603
      $region86: #{net_forward.1} parent=5 // pred_check_branch
        %2606 = sbr.rel (%p2604) target = $region88
      $region87: #{net_forward.1} parent=5 // pred_region
        %s2607 = ssub.s32 %s24, 2
        // Predicated region
        $region89: #{net_forward.1} parent=87 // pred_check
          %p2608 = pneg %p373
        $region90: #{net_forward.1} parent=87 // pred_check_branch
          %2610 = sbr.rel (%p2608) target = $region92
        $region91: #{net_forward.1} parent=87 // pred_region
          %s2611 = sand.u32 %s358, 1
          %s2612 = scalar_lea.sflag [#allocation3], %s2611
          %s2613 = sand.u32 %s358, 1
          %s2614 = scalar_lea.vmem [#allocation2], %s2613
          %2615 = dma.done %s2612, 16
        $region92: #{net_forward.1} parent=87 // pred_fallthru
          _
      $region88: #{net_forward.1} parent=5 // pred_fallthru
        _
    $region6: #{net_forward.1} parent=1 // loop_footer
      %s28 = sadd.s32 1, %s24
    $region7: #{net_forward.1} parent=1 // loop_footer_branch
      %23 = sbr.rel target = $region3
    $region8: #{net_forward.1} parent=1 // loop_exit
      _
    %2616 = vsyncpa [#allocation3], 1
    %s2617 = scalar_lea.sflag [#allocation3], 1
    %2618 = vsyncpa %s2617, 1

</llo_original>
